<compile_context>
chip_gen: v7x
topology: tpu7x:2x2x1
jax: 0.10.0
libtpu: 0.0.40
codegen_flags: <defaults>
</compile_context>

<pallas_src>
import numpy as np
import jax
import jax.numpy as jnp
from jax import lax
from jax.experimental import pallas as pl
from jax.experimental.pallas import tpu as pltpu


# VMEM accounting knobs: double-buffered coords (2*3 slabs) + ~10 live (Mpad, Cb) slab
# intermediates, plus ~64 (1, Cb)-sized rows (output double-buffer, sizes, Jacobi temps).
_SLAB_ROWS = 2 * 3 + 10
_ROW_TILES = 64


def _fast_recip(x):
    """EUP approximate reciprocal + one Newton step (~f32-accurate)."""
    r = pl.reciprocal(x, approx=True)
    return r * (2.0 - x * r)


def _jacobi_rotate(A, V, p, q):
    """One Jacobi rotation (p, q) on a symmetric 3x3 stored as (1, Cb) f32 tiles."""
    r = 3 - p - q
    app, aqq, apq = A[p][p], A[q][q], A[p][q]
    small = jnp.abs(apq) < 1e-30
    denom = jnp.where(small, 1.0, 2.0 * apq)
    # tau via approximate EUP reciprocal; clipped so tau*tau cannot overflow to inf.
    tau = (aqq - app) * pl.reciprocal(denom, approx=True)
    tau = jnp.clip(tau, -1e15, 1e15)
    abs_tau = jnp.abs(tau)
    sgn = jnp.where(tau >= 0.0, 1.0, -1.0)
    # Division-free form of t = sgn / (|tau| + sqrt(tau^2 + 1)).
    t = sgn * (jnp.sqrt(tau * tau + 1.0) - abs_tau)
    t = jnp.where(small, 0.0, t)
    c = lax.rsqrt(t * t + 1.0)          # EUP
    s = t * c
    arp, arq = A[r][p], A[r][q]

    A_new = [[A[i][j] for j in range(3)] for i in range(3)]
    A_new[p][p] = app - t * apq
    A_new[q][q] = aqq + t * apq
    zero = jnp.zeros_like(apq)
    A_new[p][q] = zero
    A_new[q][p] = zero
    A_new[r][p] = c * arp - s * arq
    A_new[p][r] = A_new[r][p]
    A_new[r][q] = s * arp + c * arq
    A_new[q][r] = A_new[r][q]

    V_new = [[V[i][j] for j in range(3)] for i in range(3)]
    for i in range(3):
        vip, viq = V[i][p], V[i][q]
        V_new[i][p] = c * vip - s * viq
        V_new[i][q] = s * vip + c * viq
    return A_new, V_new


def _geo_node_kernel(coords_ref, sizes_ref, out_ref):
    f32 = jnp.float32
    Mpad = coords_ref.shape[1]
    Cb = coords_ref.shape[2]

    size = sizes_ref[...]                                   # (1, Cb)
    inv_size = _fast_recip(jnp.maximum(size, 1.0))

    # voxel-validity mask rebuilt from counts (no mask tensor from HBM)
    vox_idx = lax.broadcasted_iota(jnp.int32, (Mpad, Cb), 0)
    m = (vox_idx < size.astype(jnp.int32)).astype(f32)      # (Mpad, Cb)

    # center + masked centered coordinate slabs
    center = []
    xcm = []
    for d in range(3):
        xd = coords_ref[d]                                  # (Mpad, Cb)
        cd = jnp.sum(xd, axis=0, keepdims=True) * inv_size  # (1, Cb)
        center.append(cd)
        xcm.append((xd - cd) * m)

    # covariance A = xc^T xc; diagonal product slabs reused for per-voxel ||xc||^2
    sq = [xcm[d] * xcm[d] for d in range(3)]
    r2 = sq[0] + sq[1] + sq[2]                              # (Mpad, Cb)
    A = [[None] * 3 for _ in range(3)]
    for d in range(3):
        A[d][d] = jnp.sum(sq[d], axis=0, keepdims=True)
    for i in range(3):
        for j in range(i + 1, 3):
            aij = jnp.sum(xcm[i] * xcm[j], axis=0, keepdims=True)
            A[i][j] = aij
            A[j][i] = aij

    # 3x3 symmetric eigensolver: unrolled cyclic Jacobi (3 sweeps, quadratic convergence)
    D = [[A[i][j] for j in range(3)] for i in range(3)]
    one = jnp.ones_like(size)
    zero = jnp.zeros_like(size)
    V = [[one if i == j else zero for j in range(3)] for i in range(3)]
    for _ in range(3):
        for (p, q) in ((0, 1), (0, 2), (1, 2)):
            D, V = _jacobi_rotate(D, V, p, q)

    wa, wb, wc = D[0][0], D[1][1], D[2][2]
    w2 = jnp.maximum(jnp.maximum(wa, wb), wc)               # largest eigenvalue
    w0 = jnp.minimum(jnp.minimum(wa, wb), wc)               # smallest
    w1 = wa + wb + wc - w2 - w0                             # middle

    # eigenvector of the largest eigenvalue
    is0 = jnp.logical_and(wa >= wb, wa >= wc)
    is1 = jnp.logical_and(jnp.logical_not(is0), wb >= wc)
    v0 = [jnp.where(is0, V[i][0], jnp.where(is1, V[i][1], V[i][2]))
          for i in range(3)]

    inv_w2 = _fast_recip(jnp.maximum(w2, 1e-30))            # guard 0 -> inf/NaN
    dirwt = 1.0 - w1 * inv_w2

    # projection on principal axis (pre-masked via xcm); perpendicular norms via
    # np0^2 = ||xc||^2 - x0^2 (no xp slabs are ever materialized); sign fix
    x0 = v0[0] * xcm[0] + v0[1] * xcm[1] + v0[2] * xcm[2]   # (Mpad, Cb)
    np0 = jnp.sqrt(jnp.maximum(r2 - x0 * x0, 0.0))
    sc = jnp.sum(x0 * np0, axis=0, keepdims=True)           # (1, Cb)
    sign = jnp.where(sc < 0.0, -1.0, 1.0)

    valid = size >= 2.0                                     # (1, Cb) bool

    feats = list(center)                                    # 0..2  : center
    for i in range(3):                                      # 3..11 : B = A / w2
        for j in range(3):
            feats.append(jnp.where(valid, A[i][j] * inv_w2, 0.0))
    for d in range(3):                                      # 12..14: dirwt * v0
        feats.append(jnp.where(valid, sign * dirwt * v0[d], 0.0))
    feats.append(size)                                      # 15    : voxel count

    # single lane-dense (16, Cb) store instead of 16 masked single-row stores
    out_ref[...] = jnp.concatenate(feats, axis=0).astype(f32)


def _cdiv(a, b):
    return -(-a // b)


def _pad8(n):
    return max(8, ((int(n) + 7) // 8) * 8)


def _tpu_generation():
    """'big_vmem' (v5e/v5p/v6e: 128 MiB, single TC) or 'small_vmem' (v7x-like / unknown)."""
    try:
        kind = jax.devices()[0].device_kind.lower()
    except Exception:
        kind = ""
    if "v5" in kind or "v6" in kind:
        return "big_vmem"
    return "small_vmem"


def _choose_block(C, Mpad, gen):
    """Pick the cluster-block lane width Cb from total-VMEM accounting."""
    per_lane = _SLAB_ROWS * Mpad * 4 + _ROW_TILES * 4
    if gen == "big_vmem":
        budget = 96 * 1024 * 1024
        cb_cap = 2048
        min_blocks = 1          # single TC: fewer, fatter blocks
    else:
        budget = 36 * 1024 * 1024
        cb_cap = 1024
        min_blocks = 2          # v7x: keep both TensorCores busy
    cb_max = max(128, min(cb_cap, (budget // per_lane) // 128 * 128))
    cb_need = max(128, _cdiv(_cdiv(C, min_blocks), 128) * 128)
    return int(min(cb_max, cb_need))


def _geo_node_features_padded(data, clusts, cluster_block, gen):
    """Run the kernel for one length bucket of clusters.  Returns (len(clusts), 16) f32."""
    C = len(clusts)
    max_len = max(len(c) for c in clusts)
    Mpad = _pad8(max_len)
    Cb = int(cluster_block) if cluster_block is not None else _choose_block(C, Mpad, gen)
    C_pad = _cdiv(C, Cb) * Cb

    # glue: ragged host-side gather into dense padded slabs (no mask tensor)
    coords = np.zeros((3, Mpad, C_pad), np.float32)
    sizes = np.zeros((1, C_pad), np.float32)
    for ci, c in enumerate(clusts):
        idx = np.asarray(c)
        coords[:, :len(idx), ci] = data[idx, 1:4].T
        sizes[0, ci] = len(idx)
    coords = jnp.asarray(coords)
    sizes = jnp.asarray(sizes)

    # vmem limit from total usage (double-buffered input + live slab intermediates + rows)
    est = (_SLAB_ROWS * Mpad * Cb + _ROW_TILES * Cb) * 4
    cap = (100 << 20) if gen == "big_vmem" else (44 << 20)
    vmem_limit = int(min(cap, max(32 << 20, est + (4 << 20))))

    out = pl.pallas_call(
        _geo_node_kernel,
        out_shape=jax.ShapeDtypeStruct((16, C_pad), jnp.float32),
        grid_spec=pltpu.PrefetchScalarGridSpec(
            num_scalar_prefetch=0,
            grid=(C_pad // Cb,),
            in_specs=[
                pl.BlockSpec((3, Mpad, Cb), lambda i: (0, 0, i)),
                pl.BlockSpec((1, Cb), lambda i: (0, i)),
            ],
            out_specs=pl.BlockSpec((16, Cb), lambda i: (0, i)),
        ),
        compiler_params=pltpu.CompilerParams(
            dimension_semantics=("parallel",),
            vmem_limit_bytes=vmem_limit),
    )(coords, sizes)
    return out[:, :C].T                                     # (C, 16)


def clust_geo_node_features(data, clusts, cluster_block=None, min_bucket_clusters=128):
    """data: (N, >=5) array (col 0 batch, cols 1:4 xyz, col 4 value, last sem);
    clusts: list of 1-D index arrays.  Returns (C, 16) f32 features."""
    data = np.asarray(data, dtype=np.float32)
    C = len(clusts)
    if C == 0:
        return jnp.zeros((0, 16), jnp.float32)

    # bucket clusters by next-pow2 padded length so one huge cluster does not inflate
    # Mpad (HBM traffic / VMEM) for everyone; small buckets merge upward
    keys = np.array([1 << int(np.ceil(np.log2(_pad8(len(c))))) for c in clusts])
    uniq = np.sort(np.unique(keys))
    buckets = []
    pending = np.zeros(0, dtype=np.int64)
    for ki, k in enumerate(uniq):
        idx = np.concatenate([pending, np.nonzero(keys == k)[0]])
        if len(idx) < min_bucket_clusters and ki + 1 < len(uniq):
            pending = idx
            continue
        buckets.append(idx)
        pending = np.zeros(0, dtype=np.int64)

    gen = _tpu_generation()
    feats_out = jnp.zeros((C, 16), jnp.float32)
    for idx in buckets:
        bucket_feats = _geo_node_features_padded(
            data, [clusts[i] for i in idx], cluster_block, gen)
        feats_out = feats_out.at[jnp.asarray(idx)].set(bucket_feats)
    return feats_out


def reference_features(data, clusts):
    """Pure NumPy mirror of the PyTorch forward (use_numpy=False, more_feats=False)."""
    data = np.asarray(data, np.float64)
    voxels = data[:, 1:4]
    feats = []
    for c in clusts:
        x = voxels[np.asarray(c)]
        size = float(len(c))
        if len(c) < 2:
            feats.append(np.concatenate([x.flatten(), np.zeros(12), [size]]))
            continue
        center = x.mean(0)
        xx = x - center
        A = xx.T @ xx
        w, v = np.linalg.eigh(A)
        dirwt = 1.0 - w[1] / w[2]
        B = A / w[2]
        v0 = v[:, 2]
        x0 = xx @ v0
        xp0 = xx - np.outer(x0, v0)
        np0 = np.linalg.norm(xp0, axis=1)
        sc = np.dot(x0, np0)
        if sc < 0:
            v0 = -v0
        v0 = dirwt * v0
        feats.append(np.concatenate([center, B.flatten(), v0, [size]]))
    return np.stack(feats).astype(np.float32)


if __name__ == "__main__":
    key = jax.random.PRNGKey(0)
    sizes = [12, 7, 20, 1, 16]           # includes a single-voxel cluster

    pts_list = []
    for n in sizes:
        key, k1, k2, k3 = jax.random.split(key, 4)
        origin = jax.random.uniform(k1, (3,), minval=0.0, maxval=10.0)
        direction = jax.random.normal(k2, (3,))
        direction = direction / jnp.linalg.norm(direction)
        t = jnp.linspace(0.0, 5.0, n)
        noise = 0.2 * jax.random.normal(k3, (n, 3))
        pts_list.append(origin[None, :] + t[:, None] * direction[None, :] + noise)
    pts = jnp.concatenate(pts_list, axis=0)
    N = pts.shape[0]

    key, kv, ks = jax.random.split(key, 3)
    values = jax.random.uniform(kv, (N, 1))
    sem = jax.random.randint(ks, (N, 1), 0, 5).astype(jnp.float32)
    batch = jnp.zeros((N, 1), jnp.float32)
    data = jnp.concatenate([batch, pts, values, sem], axis=1)   # (N, 6)

    offs = np.cumsum([0] + sizes)
    clusts = [np.arange(offs[i], offs[i + 1]) for i in range(len(sizes))]
    ref = reference_features(np.asarray(data), clusts)

    # default path: buckets merge into a single pallas_call
    feats = clust_geo_node_features(np.asarray(data), clusts)
    feats = jax.block_until_ready(feats)
    assert feats.shape == (len(sizes), 16)
    np.testing.assert_allclose(np.asarray(feats), ref, atol=2e-3, rtol=2e-3)

    # forced multi-bucket path: one pallas_call per padded-length bucket
    feats_b = clust_geo_node_features(np.asarray(data), clusts, min_bucket_clusters=1)
    feats_b = jax.block_until_ready(feats_b)
    np.testing.assert_allclose(np.asarray(feats_b), ref, atol=2e-3, rtol=2e-3)

    print("KERNEL_OK")
</pallas_src>

<mosaic_0001>
module attributes {stable_mosaic.version = 11 : i64} {
  func.func @_geo_node_kernel(%arg0: i32, %arg1: memref<3x24x128xf32, #tpu.memory_space<vmem>>, %arg2: memref<1x128xf32, #tpu.memory_space<vmem>>, %arg3: memref<16x128xf32, #tpu.memory_space<vmem>>) attributes {dimension_semantics = [#tpu.dimension_semantics<parallel>], iteration_bounds = array<i64: 1>, scalar_prefetch = 0 : i64, scratch_operands = 0 : i64, tpu.core_type = #tpu.core_type<tc>, window_params = [{transform_indices = @transform_0, window_bounds = array<i64: 3, 24, 128>}, {transform_indices = @transform_1, window_bounds = array<i64: 1, 128>}, {transform_indices = @transform_2, window_bounds = array<i64: 16, 128>}]} {
    %c0 = arith.constant 0 : index
    %c0_0 = arith.constant 0 : index
    %0 = vector.load %arg2[%c0, %c0_0] : memref<1x128xf32, #tpu.memory_space<vmem>>, vector<1x128xf32>
    %cst = arith.constant 1.000000e+00 : f32
    %1 = vector.broadcast %cst : f32 to vector<1x128xf32>
    %2 = arith.maximumf %0, %1 : vector<1x128xf32>
    %3 = tpu.reciprocal %2 {approx = true} : vector<1x128xf32> -> vector<1x128xf32>
    %4 = arith.mulf %2, %3 : vector<1x128xf32>
    %cst_1 = arith.constant 2.000000e+00 : f32
    %5 = vector.broadcast %cst_1 : f32 to vector<1x128xf32>
    %6 = arith.subf %5, %4 : vector<1x128xf32>
    %7 = arith.mulf %3, %6 : vector<1x128xf32>
    %8 = tpu.iota {dimensions = array<i32: 0>} : vector<24x128xi32>
    %9 = arith.fptosi %0 : vector<1x128xf32> to vector<1x128xi32>
    %10 = vector.broadcast %9 : vector<1x128xi32> to vector<24x128xi32>
    %11 = arith.cmpi slt, %8, %10 : vector<24x128xi32>
    %12 = arith.extui %11 : vector<24x128xi1> to vector<24x128xi32>
    %13 = arith.sitofp %12 : vector<24x128xi32> to vector<24x128xf32>
    %c0_2 = arith.constant 0 : index
    %c0_3 = arith.constant 0 : index
    %c0_4 = arith.constant 0 : index
    %14 = vector.load %arg1[%c0_2, %c0_3, %c0_4] : memref<3x24x128xf32, #tpu.memory_space<vmem>>, vector<1x24x128xf32>
    %15 = vector.shape_cast %14 : vector<1x24x128xf32> to vector<24x128xf32>
    %cst_5 = arith.constant dense<0.000000e+00> : vector<128xf32>
    %16 = vector.multi_reduction <add>, %15, %cst_5 [0] : vector<24x128xf32> to vector<128xf32>
    %17 = vector.shape_cast %16 : vector<128xf32> to vector<1x128xf32>
    %18 = arith.mulf %17, %7 : vector<1x128xf32>
    %19 = vector.broadcast %18 : vector<1x128xf32> to vector<24x128xf32>
    %20 = arith.subf %15, %19 : vector<24x128xf32>
    %21 = arith.mulf %20, %13 : vector<24x128xf32>
    %c1 = arith.constant 1 : index
    %c0_6 = arith.constant 0 : index
    %c0_7 = arith.constant 0 : index
    %22 = vector.load %arg1[%c1, %c0_6, %c0_7] : memref<3x24x128xf32, #tpu.memory_space<vmem>>, vector<1x24x128xf32>
    %23 = vector.shape_cast %22 : vector<1x24x128xf32> to vector<24x128xf32>
    %cst_8 = arith.constant dense<0.000000e+00> : vector<128xf32>
    %24 = vector.multi_reduction <add>, %23, %cst_8 [0] : vector<24x128xf32> to vector<128xf32>
    %25 = vector.shape_cast %24 : vector<128xf32> to vector<1x128xf32>
    %26 = arith.mulf %25, %7 : vector<1x128xf32>
    %27 = vector.broadcast %26 : vector<1x128xf32> to vector<24x128xf32>
    %28 = arith.subf %23, %27 : vector<24x128xf32>
    %29 = arith.mulf %28, %13 : vector<24x128xf32>
    %c2 = arith.constant 2 : index
    %c0_9 = arith.constant 0 : index
    %c0_10 = arith.constant 0 : index
    %30 = vector.load %arg1[%c2, %c0_9, %c0_10] : memref<3x24x128xf32, #tpu.memory_space<vmem>>, vector<1x24x128xf32>
    %31 = vector.shape_cast %30 : vector<1x24x128xf32> to vector<24x128xf32>
    %cst_11 = arith.constant dense<0.000000e+00> : vector<128xf32>
    %32 = vector.multi_reduction <add>, %31, %cst_11 [0] : vector<24x128xf32> to vector<128xf32>
    %33 = vector.shape_cast %32 : vector<128xf32> to vector<1x128xf32>
    %34 = arith.mulf %33, %7 : vector<1x128xf32>
    %35 = vector.broadcast %34 : vector<1x128xf32> to vector<24x128xf32>
    %36 = arith.subf %31, %35 : vector<24x128xf32>
    %37 = arith.mulf %36, %13 : vector<24x128xf32>
    %38 = arith.mulf %21, %21 : vector<24x128xf32>
    %39 = arith.mulf %29, %29 : vector<24x128xf32>
    %40 = arith.mulf %37, %37 : vector<24x128xf32>
    %41 = arith.addf %38, %39 : vector<24x128xf32>
    %42 = arith.addf %41, %40 : vector<24x128xf32>
    %cst_12 = arith.constant dense<0.000000e+00> : vector<128xf32>
    %43 = vector.multi_reduction <add>, %38, %cst_12 [0] : vector<24x128xf32> to vector<128xf32>
    %44 = vector.shape_cast %43 : vector<128xf32> to vector<1x128xf32>
    %cst_13 = arith.constant dense<0.000000e+00> : vector<128xf32>
    %45 = vector.multi_reduction <add>, %39, %cst_13 [0] : vector<24x128xf32> to vector<128xf32>
    %46 = vector.shape_cast %45 : vector<128xf32> to vector<1x128xf32>
    %cst_14 = arith.constant dense<0.000000e+00> : vector<128xf32>
    %47 = vector.multi_reduction <add>, %40, %cst_14 [0] : vector<24x128xf32> to vector<128xf32>
    %48 = vector.shape_cast %47 : vector<128xf32> to vector<1x128xf32>
    %49 = arith.mulf %21, %29 : vector<24x128xf32>
    %cst_15 = arith.constant dense<0.000000e+00> : vector<128xf32>
    %50 = vector.multi_reduction <add>, %49, %cst_15 [0] : vector<24x128xf32> to vector<128xf32>
    %51 = vector.shape_cast %50 : vector<128xf32> to vector<1x128xf32>
    %52 = arith.mulf %21, %37 : vector<24x128xf32>
    %cst_16 = arith.constant dense<0.000000e+00> : vector<128xf32>
    %53 = vector.multi_reduction <add>, %52, %cst_16 [0] : vector<24x128xf32> to vector<128xf32>
    %54 = vector.shape_cast %53 : vector<128xf32> to vector<1x128xf32>
    %55 = arith.mulf %29, %37 : vector<24x128xf32>
    %cst_17 = arith.constant dense<0.000000e+00> : vector<128xf32>
    %56 = vector.multi_reduction <add>, %55, %cst_17 [0] : vector<24x128xf32> to vector<128xf32>
    %57 = vector.shape_cast %56 : vector<128xf32> to vector<1x128xf32>
    %cst_18 = arith.constant 1.000000e+00 : f32
    %58 = vector.broadcast %cst_18 : f32 to vector<1x128xf32>
    %cst_19 = arith.constant 0.000000e+00 : f32
    %59 = vector.broadcast %cst_19 : f32 to vector<1x128xf32>
    %60 = math.absf %51 : vector<1x128xf32>
    %cst_20 = arith.constant 1.000000e-30 : f32
    %61 = vector.broadcast %cst_20 : f32 to vector<1x128xf32>
    %62 = arith.cmpf olt, %60, %61 : vector<1x128xf32>
    %cst_21 = arith.constant 2.000000e+00 : f32
    %63 = vector.broadcast %cst_21 : f32 to vector<1x128xf32>
    %64 = arith.mulf %63, %51 : vector<1x128xf32>
    %cst_22 = arith.constant 1.000000e+00 : f32
    %65 = vector.broadcast %cst_22 : f32 to vector<1x128xf32>
    %66 = arith.select %62, %65, %64 : vector<1x128xi1>, vector<1x128xf32>
    %67 = arith.subf %46, %44 : vector<1x128xf32>
    %68 = tpu.reciprocal %66 {approx = true} : vector<1x128xf32> -> vector<1x128xf32>
    %69 = arith.mulf %67, %68 : vector<1x128xf32>
    %cst_23 = arith.constant -9.99999986E+14 : f32
    %cst_24 = arith.constant 9.99999986E+14 : f32
    %70 = vector.broadcast %cst_23 : f32 to vector<1x128xf32>
    %71 = arith.maximumf %70, %69 : vector<1x128xf32>
    %72 = vector.broadcast %cst_24 : f32 to vector<1x128xf32>
    %73 = arith.minimumf %72, %71 : vector<1x128xf32>
    %74 = math.absf %73 : vector<1x128xf32>
    %cst_25 = arith.constant 0.000000e+00 : f32
    %75 = vector.broadcast %cst_25 : f32 to vector<1x128xf32>
    %76 = arith.cmpf oge, %73, %75 : vector<1x128xf32>
    %cst_26 = arith.constant 1.000000e+00 : f32
    %cst_27 = arith.constant -1.000000e+00 : f32
    %77 = vector.broadcast %cst_26 : f32 to vector<1x128xf32>
    %78 = vector.broadcast %cst_27 : f32 to vector<1x128xf32>
    %79 = arith.select %76, %77, %78 : vector<1x128xi1>, vector<1x128xf32>
    %80 = arith.mulf %73, %73 : vector<1x128xf32>
    %cst_28 = arith.constant 1.000000e+00 : f32
    %81 = vector.broadcast %cst_28 : f32 to vector<1x128xf32>
    %82 = arith.addf %80, %81 : vector<1x128xf32>
    %83 = math.sqrt %82 : vector<1x128xf32>
    %84 = arith.subf %83, %74 : vector<1x128xf32>
    %85 = arith.mulf %79, %84 : vector<1x128xf32>
    %cst_29 = arith.constant 0.000000e+00 : f32
    %86 = vector.broadcast %cst_29 : f32 to vector<1x128xf32>
    %87 = arith.select %62, %86, %85 : vector<1x128xi1>, vector<1x128xf32>
    %88 = arith.mulf %87, %87 : vector<1x128xf32>
    %cst_30 = arith.constant 1.000000e+00 : f32
    %89 = vector.broadcast %cst_30 : f32 to vector<1x128xf32>
    %90 = arith.addf %88, %89 : vector<1x128xf32>
    %91 = math.rsqrt %90 : vector<1x128xf32>
    %92 = arith.mulf %87, %91 : vector<1x128xf32>
    %93 = arith.mulf %87, %51 : vector<1x128xf32>
    %94 = arith.subf %44, %93 : vector<1x128xf32>
    %95 = arith.mulf %87, %51 : vector<1x128xf32>
    %96 = arith.addf %46, %95 : vector<1x128xf32>
    %cst_31 = arith.constant 0.000000e+00 : f32
    %97 = vector.broadcast %cst_31 : f32 to vector<1x128xf32>
    %98 = arith.mulf %91, %54 : vector<1x128xf32>
    %99 = arith.mulf %92, %57 : vector<1x128xf32>
    %100 = arith.subf %98, %99 : vector<1x128xf32>
    %101 = arith.mulf %92, %54 : vector<1x128xf32>
    %102 = arith.mulf %91, %57 : vector<1x128xf32>
    %103 = arith.addf %101, %102 : vector<1x128xf32>
    %104 = arith.mulf %91, %58 : vector<1x128xf32>
    %105 = arith.mulf %92, %59 : vector<1x128xf32>
    %106 = arith.subf %104, %105 : vector<1x128xf32>
    %107 = arith.mulf %92, %58 : vector<1x128xf32>
    %108 = arith.mulf %91, %59 : vector<1x128xf32>
    %109 = arith.addf %107, %108 : vector<1x128xf32>
    %110 = arith.mulf %91, %59 : vector<1x128xf32>
    %111 = arith.mulf %92, %58 : vector<1x128xf32>
    %112 = arith.subf %110, %111 : vector<1x128xf32>
    %113 = arith.mulf %92, %59 : vector<1x128xf32>
    %114 = arith.mulf %91, %58 : vector<1x128xf32>
    %115 = arith.addf %113, %114 : vector<1x128xf32>
    %116 = arith.mulf %91, %59 : vector<1x128xf32>
    %117 = arith.mulf %92, %59 : vector<1x128xf32>
    %118 = arith.subf %116, %117 : vector<1x128xf32>
    %119 = arith.mulf %92, %59 : vector<1x128xf32>
    %120 = arith.mulf %91, %59 : vector<1x128xf32>
    %121 = arith.addf %119, %120 : vector<1x128xf32>
    %122 = math.absf %100 : vector<1x128xf32>
    %cst_32 = arith.constant 1.000000e-30 : f32
    %123 = vector.broadcast %cst_32 : f32 to vector<1x128xf32>
    %124 = arith.cmpf olt, %122, %123 : vector<1x128xf32>
    %cst_33 = arith.constant 2.000000e+00 : f32
    %125 = vector.broadcast %cst_33 : f32 to vector<1x128xf32>
    %126 = arith.mulf %125, %100 : vector<1x128xf32>
    %cst_34 = arith.constant 1.000000e+00 : f32
    %127 = vector.broadcast %cst_34 : f32 to vector<1x128xf32>
    %128 = arith.select %124, %127, %126 : vector<1x128xi1>, vector<1x128xf32>
    %129 = arith.subf %48, %94 : vector<1x128xf32>
    %130 = tpu.reciprocal %128 {approx = true} : vector<1x128xf32> -> vector<1x128xf32>
    %131 = arith.mulf %129, %130 : vector<1x128xf32>
    %cst_35 = arith.constant -9.99999986E+14 : f32
    %cst_36 = arith.constant 9.99999986E+14 : f32
    %132 = vector.broadcast %cst_35 : f32 to vector<1x128xf32>
    %133 = arith.maximumf %132, %131 : vector<1x128xf32>
    %134 = vector.broadcast %cst_36 : f32 to vector<1x128xf32>
    %135 = arith.minimumf %134, %133 : vector<1x128xf32>
    %136 = math.absf %135 : vector<1x128xf32>
    %cst_37 = arith.constant 0.000000e+00 : f32
    %137 = vector.broadcast %cst_37 : f32 to vector<1x128xf32>
    %138 = arith.cmpf oge, %135, %137 : vector<1x128xf32>
    %cst_38 = arith.constant 1.000000e+00 : f32
    %cst_39 = arith.constant -1.000000e+00 : f32
    %139 = vector.broadcast %cst_38 : f32 to vector<1x128xf32>
    %140 = vector.broadcast %cst_39 : f32 to vector<1x128xf32>
    %141 = arith.select %138, %139, %140 : vector<1x128xi1>, vector<1x128xf32>
    %142 = arith.mulf %135, %135 : vector<1x128xf32>
    %cst_40 = arith.constant 1.000000e+00 : f32
    %143 = vector.broadcast %cst_40 : f32 to vector<1x128xf32>
    %144 = arith.addf %142, %143 : vector<1x128xf32>
    %145 = math.sqrt %144 : vector<1x128xf32>
    %146 = arith.subf %145, %136 : vector<1x128xf32>
    %147 = arith.mulf %141, %146 : vector<1x128xf32>
    %cst_41 = arith.constant 0.000000e+00 : f32
    %148 = vector.broadcast %cst_41 : f32 to vector<1x128xf32>
    %149 = arith.select %124, %148, %147 : vector<1x128xi1>, vector<1x128xf32>
    %150 = arith.mulf %149, %149 : vector<1x128xf32>
    %cst_42 = arith.constant 1.000000e+00 : f32
    %151 = vector.broadcast %cst_42 : f32 to vector<1x128xf32>
    %152 = arith.addf %150, %151 : vector<1x128xf32>
    %153 = math.rsqrt %152 : vector<1x128xf32>
    %154 = arith.mulf %149, %153 : vector<1x128xf32>
    %155 = arith.mulf %149, %100 : vector<1x128xf32>
    %156 = arith.subf %94, %155 : vector<1x128xf32>
    %157 = arith.mulf %149, %100 : vector<1x128xf32>
    %158 = arith.addf %48, %157 : vector<1x128xf32>
    %cst_43 = arith.constant 0.000000e+00 : f32
    %159 = vector.broadcast %cst_43 : f32 to vector<1x128xf32>
    %160 = arith.mulf %153, %97 : vector<1x128xf32>
    %161 = arith.mulf %154, %103 : vector<1x128xf32>
    %162 = arith.subf %160, %161 : vector<1x128xf32>
    %163 = arith.mulf %154, %97 : vector<1x128xf32>
    %164 = arith.mulf %153, %103 : vector<1x128xf32>
    %165 = arith.addf %163, %164 : vector<1x128xf32>
    %166 = arith.mulf %153, %106 : vector<1x128xf32>
    %167 = arith.mulf %154, %59 : vector<1x128xf32>
    %168 = arith.subf %166, %167 : vector<1x128xf32>
    %169 = arith.mulf %154, %106 : vector<1x128xf32>
    %170 = arith.mulf %153, %59 : vector<1x128xf32>
    %171 = arith.addf %169, %170 : vector<1x128xf32>
    %172 = arith.mulf %153, %112 : vector<1x128xf32>
    %173 = arith.mulf %154, %59 : vector<1x128xf32>
    %174 = arith.subf %172, %173 : vector<1x128xf32>
    %175 = arith.mulf %154, %112 : vector<1x128xf32>
    %176 = arith.mulf %153, %59 : vector<1x128xf32>
    %177 = arith.addf %175, %176 : vector<1x128xf32>
    %178 = arith.mulf %153, %118 : vector<1x128xf32>
    %179 = arith.mulf %154, %58 : vector<1x128xf32>
    %180 = arith.subf %178, %179 : vector<1x128xf32>
    %181 = arith.mulf %154, %118 : vector<1x128xf32>
    %182 = arith.mulf %153, %58 : vector<1x128xf32>
    %183 = arith.addf %181, %182 : vector<1x128xf32>
    %184 = math.absf %165 : vector<1x128xf32>
    %cst_44 = arith.constant 1.000000e-30 : f32
    %185 = vector.broadcast %cst_44 : f32 to vector<1x128xf32>
    %186 = arith.cmpf olt, %184, %185 : vector<1x128xf32>
    %cst_45 = arith.constant 2.000000e+00 : f32
    %187 = vector.broadcast %cst_45 : f32 to vector<1x128xf32>
    %188 = arith.mulf %187, %165 : vector<1x128xf32>
    %cst_46 = arith.constant 1.000000e+00 : f32
    %189 = vector.broadcast %cst_46 : f32 to vector<1x128xf32>
    %190 = arith.select %186, %189, %188 : vector<1x128xi1>, vector<1x128xf32>
    %191 = arith.subf %158, %96 : vector<1x128xf32>
    %192 = tpu.reciprocal %190 {approx = true} : vector<1x128xf32> -> vector<1x128xf32>
    %193 = arith.mulf %191, %192 : vector<1x128xf32>
    %cst_47 = arith.constant -9.99999986E+14 : f32
    %cst_48 = arith.constant 9.99999986E+14 : f32
    %194 = vector.broadcast %cst_47 : f32 to vector<1x128xf32>
    %195 = arith.maximumf %194, %193 : vector<1x128xf32>
    %196 = vector.broadcast %cst_48 : f32 to vector<1x128xf32>
    %197 = arith.minimumf %196, %195 : vector<1x128xf32>
    %198 = math.absf %197 : vector<1x128xf32>
    %cst_49 = arith.constant 0.000000e+00 : f32
    %199 = vector.broadcast %cst_49 : f32 to vector<1x128xf32>
    %200 = arith.cmpf oge, %197, %199 : vector<1x128xf32>
    %cst_50 = arith.constant 1.000000e+00 : f32
    %cst_51 = arith.constant -1.000000e+00 : f32
    %201 = vector.broadcast %cst_50 : f32 to vector<1x128xf32>
    %202 = vector.broadcast %cst_51 : f32 to vector<1x128xf32>
    %203 = arith.select %200, %201, %202 : vector<1x128xi1>, vector<1x128xf32>
    %204 = arith.mulf %197, %197 : vector<1x128xf32>
    %cst_52 = arith.constant 1.000000e+00 : f32
    %205 = vector.broadcast %cst_52 : f32 to vector<1x128xf32>
    %206 = arith.addf %204, %205 : vector<1x128xf32>
    %207 = math.sqrt %206 : vector<1x128xf32>
    %208 = arith.subf %207, %198 : vector<1x128xf32>
    %209 = arith.mulf %203, %208 : vector<1x128xf32>
    %cst_53 = arith.constant 0.000000e+00 : f32
    %210 = vector.broadcast %cst_53 : f32 to vector<1x128xf32>
    %211 = arith.select %186, %210, %209 : vector<1x128xi1>, vector<1x128xf32>
    %212 = arith.mulf %211, %211 : vector<1x128xf32>
    %cst_54 = arith.constant 1.000000e+00 : f32
    %213 = vector.broadcast %cst_54 : f32 to vector<1x128xf32>
    %214 = arith.addf %212, %213 : vector<1x128xf32>
    %215 = math.rsqrt %214 : vector<1x128xf32>
    %216 = arith.mulf %211, %215 : vector<1x128xf32>
    %217 = arith.mulf %211, %165 : vector<1x128xf32>
    %218 = arith.subf %96, %217 : vector<1x128xf32>
    %219 = arith.mulf %211, %165 : vector<1x128xf32>
    %220 = arith.addf %158, %219 : vector<1x128xf32>
    %cst_55 = arith.constant 0.000000e+00 : f32
    %221 = vector.broadcast %cst_55 : f32 to vector<1x128xf32>
    %222 = arith.mulf %215, %162 : vector<1x128xf32>
    %223 = arith.mulf %216, %159 : vector<1x128xf32>
    %224 = arith.subf %222, %223 : vector<1x128xf32>
    %225 = arith.mulf %216, %162 : vector<1x128xf32>
    %226 = arith.mulf %215, %159 : vector<1x128xf32>
    %227 = arith.addf %225, %226 : vector<1x128xf32>
    %228 = arith.mulf %215, %109 : vector<1x128xf32>
    %229 = arith.mulf %216, %171 : vector<1x128xf32>
    %230 = arith.subf %228, %229 : vector<1x128xf32>
    %231 = arith.mulf %216, %109 : vector<1x128xf32>
    %232 = arith.mulf %215, %171 : vector<1x128xf32>
    %233 = arith.addf %231, %232 : vector<1x128xf32>
    %234 = arith.mulf %215, %115 : vector<1x128xf32>
    %235 = arith.mulf %216, %177 : vector<1x128xf32>
    %236 = arith.subf %234, %235 : vector<1x128xf32>
    %237 = arith.mulf %216, %115 : vector<1x128xf32>
    %238 = arith.mulf %215, %177 : vector<1x128xf32>
    %239 = arith.addf %237, %238 : vector<1x128xf32>
    %240 = arith.mulf %215, %121 : vector<1x128xf32>
    %241 = arith.mulf %216, %183 : vector<1x128xf32>
    %242 = arith.subf %240, %241 : vector<1x128xf32>
    %243 = arith.mulf %216, %121 : vector<1x128xf32>
    %244 = arith.mulf %215, %183 : vector<1x128xf32>
    %245 = arith.addf %243, %244 : vector<1x128xf32>
    %246 = math.absf %224 : vector<1x128xf32>
    %cst_56 = arith.constant 1.000000e-30 : f32
    %247 = vector.broadcast %cst_56 : f32 to vector<1x128xf32>
    %248 = arith.cmpf olt, %246, %247 : vector<1x128xf32>
    %cst_57 = arith.constant 2.000000e+00 : f32
    %249 = vector.broadcast %cst_57 : f32 to vector<1x128xf32>
    %250 = arith.mulf %249, %224 : vector<1x128xf32>
    %cst_58 = arith.constant 1.000000e+00 : f32
    %251 = vector.broadcast %cst_58 : f32 to vector<1x128xf32>
    %252 = arith.select %248, %251, %250 : vector<1x128xi1>, vector<1x128xf32>
    %253 = arith.subf %218, %156 : vector<1x128xf32>
    %254 = tpu.reciprocal %252 {approx = true} : vector<1x128xf32> -> vector<1x128xf32>
    %255 = arith.mulf %253, %254 : vector<1x128xf32>
    %cst_59 = arith.constant -9.99999986E+14 : f32
    %cst_60 = arith.constant 9.99999986E+14 : f32
    %256 = vector.broadcast %cst_59 : f32 to vector<1x128xf32>
    %257 = arith.maximumf %256, %255 : vector<1x128xf32>
    %258 = vector.broadcast %cst_60 : f32 to vector<1x128xf32>
    %259 = arith.minimumf %258, %257 : vector<1x128xf32>
    %260 = math.absf %259 : vector<1x128xf32>
    %cst_61 = arith.constant 0.000000e+00 : f32
    %261 = vector.broadcast %cst_61 : f32 to vector<1x128xf32>
    %262 = arith.cmpf oge, %259, %261 : vector<1x128xf32>
    %cst_62 = arith.constant 1.000000e+00 : f32
    %cst_63 = arith.constant -1.000000e+00 : f32
    %263 = vector.broadcast %cst_62 : f32 to vector<1x128xf32>
    %264 = vector.broadcast %cst_63 : f32 to vector<1x128xf32>
    %265 = arith.select %262, %263, %264 : vector<1x128xi1>, vector<1x128xf32>
    %266 = arith.mulf %259, %259 : vector<1x128xf32>
    %cst_64 = arith.constant 1.000000e+00 : f32
    %267 = vector.broadcast %cst_64 : f32 to vector<1x128xf32>
    %268 = arith.addf %266, %267 : vector<1x128xf32>
    %269 = math.sqrt %268 : vector<1x128xf32>
    %270 = arith.subf %269, %260 : vector<1x128xf32>
    %271 = arith.mulf %265, %270 : vector<1x128xf32>
    %cst_65 = arith.constant 0.000000e+00 : f32
    %272 = vector.broadcast %cst_65 : f32 to vector<1x128xf32>
    %273 = arith.select %248, %272, %271 : vector<1x128xi1>, vector<1x128xf32>
    %274 = arith.mulf %273, %273 : vector<1x128xf32>
    %cst_66 = arith.constant 1.000000e+00 : f32
    %275 = vector.broadcast %cst_66 : f32 to vector<1x128xf32>
    %276 = arith.addf %274, %275 : vector<1x128xf32>
    %277 = math.rsqrt %276 : vector<1x128xf32>
    %278 = arith.mulf %273, %277 : vector<1x128xf32>
    %279 = arith.mulf %273, %224 : vector<1x128xf32>
    %280 = arith.subf %156, %279 : vector<1x128xf32>
    %281 = arith.mulf %273, %224 : vector<1x128xf32>
    %282 = arith.addf %218, %281 : vector<1x128xf32>
    %cst_67 = arith.constant 0.000000e+00 : f32
    %283 = vector.broadcast %cst_67 : f32 to vector<1x128xf32>
    %284 = arith.mulf %277, %227 : vector<1x128xf32>
    %285 = arith.mulf %278, %221 : vector<1x128xf32>
    %286 = arith.subf %284, %285 : vector<1x128xf32>
    %287 = arith.mulf %278, %227 : vector<1x128xf32>
    %288 = arith.mulf %277, %221 : vector<1x128xf32>
    %289 = arith.addf %287, %288 : vector<1x128xf32>
    %290 = arith.mulf %277, %168 : vector<1x128xf32>
    %291 = arith.mulf %278, %230 : vector<1x128xf32>
    %292 = arith.subf %290, %291 : vector<1x128xf32>
    %293 = arith.mulf %278, %168 : vector<1x128xf32>
    %294 = arith.mulf %277, %230 : vector<1x128xf32>
    %295 = arith.addf %293, %294 : vector<1x128xf32>
    %296 = arith.mulf %277, %174 : vector<1x128xf32>
    %297 = arith.mulf %278, %236 : vector<1x128xf32>
    %298 = arith.subf %296, %297 : vector<1x128xf32>
    %299 = arith.mulf %278, %174 : vector<1x128xf32>
    %300 = arith.mulf %277, %236 : vector<1x128xf32>
    %301 = arith.addf %299, %300 : vector<1x128xf32>
    %302 = arith.mulf %277, %180 : vector<1x128xf32>
    %303 = arith.mulf %278, %242 : vector<1x128xf32>
    %304 = arith.subf %302, %303 : vector<1x128xf32>
    %305 = arith.mulf %278, %180 : vector<1x128xf32>
    %306 = arith.mulf %277, %242 : vector<1x128xf32>
    %307 = arith.addf %305, %306 : vector<1x128xf32>
    %308 = math.absf %286 : vector<1x128xf32>
    %cst_68 = arith.constant 1.000000e-30 : f32
    %309 = vector.broadcast %cst_68 : f32 to vector<1x128xf32>
    %310 = arith.cmpf olt, %308, %309 : vector<1x128xf32>
    %cst_69 = arith.constant 2.000000e+00 : f32
    %311 = vector.broadcast %cst_69 : f32 to vector<1x128xf32>
    %312 = arith.mulf %311, %286 : vector<1x128xf32>
    %cst_70 = arith.constant 1.000000e+00 : f32
    %313 = vector.broadcast %cst_70 : f32 to vector<1x128xf32>
    %314 = arith.select %310, %313, %312 : vector<1x128xi1>, vector<1x128xf32>
    %315 = arith.subf %220, %280 : vector<1x128xf32>
    %316 = tpu.reciprocal %314 {approx = true} : vector<1x128xf32> -> vector<1x128xf32>
    %317 = arith.mulf %315, %316 : vector<1x128xf32>
    %cst_71 = arith.constant -9.99999986E+14 : f32
    %cst_72 = arith.constant 9.99999986E+14 : f32
    %318 = vector.broadcast %cst_71 : f32 to vector<1x128xf32>
    %319 = arith.maximumf %318, %317 : vector<1x128xf32>
    %320 = vector.broadcast %cst_72 : f32 to vector<1x128xf32>
    %321 = arith.minimumf %320, %319 : vector<1x128xf32>
    %322 = math.absf %321 : vector<1x128xf32>
    %cst_73 = arith.constant 0.000000e+00 : f32
    %323 = vector.broadcast %cst_73 : f32 to vector<1x128xf32>
    %324 = arith.cmpf oge, %321, %323 : vector<1x128xf32>
    %cst_74 = arith.constant 1.000000e+00 : f32
    %cst_75 = arith.constant -1.000000e+00 : f32
    %325 = vector.broadcast %cst_74 : f32 to vector<1x128xf32>
    %326 = vector.broadcast %cst_75 : f32 to vector<1x128xf32>
    %327 = arith.select %324, %325, %326 : vector<1x128xi1>, vector<1x128xf32>
    %328 = arith.mulf %321, %321 : vector<1x128xf32>
    %cst_76 = arith.constant 1.000000e+00 : f32
    %329 = vector.broadcast %cst_76 : f32 to vector<1x128xf32>
    %330 = arith.addf %328, %329 : vector<1x128xf32>
    %331 = math.sqrt %330 : vector<1x128xf32>
    %332 = arith.subf %331, %322 : vector<1x128xf32>
    %333 = arith.mulf %327, %332 : vector<1x128xf32>
    %cst_77 = arith.constant 0.000000e+00 : f32
    %334 = vector.broadcast %cst_77 : f32 to vector<1x128xf32>
    %335 = arith.select %310, %334, %333 : vector<1x128xi1>, vector<1x128xf32>
    %336 = arith.mulf %335, %335 : vector<1x128xf32>
    %cst_78 = arith.constant 1.000000e+00 : f32
    %337 = vector.broadcast %cst_78 : f32 to vector<1x128xf32>
    %338 = arith.addf %336, %337 : vector<1x128xf32>
    %339 = math.rsqrt %338 : vector<1x128xf32>
    %340 = arith.mulf %335, %339 : vector<1x128xf32>
    %341 = arith.mulf %335, %286 : vector<1x128xf32>
    %342 = arith.subf %280, %341 : vector<1x128xf32>
    %343 = arith.mulf %335, %286 : vector<1x128xf32>
    %344 = arith.addf %220, %343 : vector<1x128xf32>
    %cst_79 = arith.constant 0.000000e+00 : f32
    %345 = vector.broadcast %cst_79 : f32 to vector<1x128xf32>
    %346 = arith.mulf %339, %283 : vector<1x128xf32>
    %347 = arith.mulf %340, %289 : vector<1x128xf32>
    %348 = arith.subf %346, %347 : vector<1x128xf32>
    %349 = arith.mulf %340, %283 : vector<1x128xf32>
    %350 = arith.mulf %339, %289 : vector<1x128xf32>
    %351 = arith.addf %349, %350 : vector<1x128xf32>
    %352 = arith.mulf %339, %292 : vector<1x128xf32>
    %353 = arith.mulf %340, %233 : vector<1x128xf32>
    %354 = arith.subf %352, %353 : vector<1x128xf32>
    %355 = arith.mulf %340, %292 : vector<1x128xf32>
    %356 = arith.mulf %339, %233 : vector<1x128xf32>
    %357 = arith.addf %355, %356 : vector<1x128xf32>
    %358 = arith.mulf %339, %298 : vector<1x128xf32>
    %359 = arith.mulf %340, %239 : vector<1x128xf32>
    %360 = arith.subf %358, %359 : vector<1x128xf32>
    %361 = arith.mulf %340, %298 : vector<1x128xf32>
    %362 = arith.mulf %339, %239 : vector<1x128xf32>
    %363 = arith.addf %361, %362 : vector<1x128xf32>
    %364 = arith.mulf %339, %304 : vector<1x128xf32>
    %365 = arith.mulf %340, %245 : vector<1x128xf32>
    %366 = arith.subf %364, %365 : vector<1x128xf32>
    %367 = arith.mulf %340, %304 : vector<1x128xf32>
    %368 = arith.mulf %339, %245 : vector<1x128xf32>
    %369 = arith.addf %367, %368 : vector<1x128xf32>
    %370 = math.absf %351 : vector<1x128xf32>
    %cst_80 = arith.constant 1.000000e-30 : f32
    %371 = vector.broadcast %cst_80 : f32 to vector<1x128xf32>
    %372 = arith.cmpf olt, %370, %371 : vector<1x128xf32>
    %cst_81 = arith.constant 2.000000e+00 : f32
    %373 = vector.broadcast %cst_81 : f32 to vector<1x128xf32>
    %374 = arith.mulf %373, %351 : vector<1x128xf32>
    %cst_82 = arith.constant 1.000000e+00 : f32
    %375 = vector.broadcast %cst_82 : f32 to vector<1x128xf32>
    %376 = arith.select %372, %375, %374 : vector<1x128xi1>, vector<1x128xf32>
    %377 = arith.subf %344, %282 : vector<1x128xf32>
    %378 = tpu.reciprocal %376 {approx = true} : vector<1x128xf32> -> vector<1x128xf32>
    %379 = arith.mulf %377, %378 : vector<1x128xf32>
    %cst_83 = arith.constant -9.99999986E+14 : f32
    %cst_84 = arith.constant 9.99999986E+14 : f32
    %380 = vector.broadcast %cst_83 : f32 to vector<1x128xf32>
    %381 = arith.maximumf %380, %379 : vector<1x128xf32>
    %382 = vector.broadcast %cst_84 : f32 to vector<1x128xf32>
    %383 = arith.minimumf %382, %381 : vector<1x128xf32>
    %384 = math.absf %383 : vector<1x128xf32>
    %cst_85 = arith.constant 0.000000e+00 : f32
    %385 = vector.broadcast %cst_85 : f32 to vector<1x128xf32>
    %386 = arith.cmpf oge, %383, %385 : vector<1x128xf32>
    %cst_86 = arith.constant 1.000000e+00 : f32
    %cst_87 = arith.constant -1.000000e+00 : f32
    %387 = vector.broadcast %cst_86 : f32 to vector<1x128xf32>
    %388 = vector.broadcast %cst_87 : f32 to vector<1x128xf32>
    %389 = arith.select %386, %387, %388 : vector<1x128xi1>, vector<1x128xf32>
    %390 = arith.mulf %383, %383 : vector<1x128xf32>
    %cst_88 = arith.constant 1.000000e+00 : f32
    %391 = vector.broadcast %cst_88 : f32 to vector<1x128xf32>
    %392 = arith.addf %390, %391 : vector<1x128xf32>
    %393 = math.sqrt %392 : vector<1x128xf32>
    %394 = arith.subf %393, %384 : vector<1x128xf32>
    %395 = arith.mulf %389, %394 : vector<1x128xf32>
    %cst_89 = arith.constant 0.000000e+00 : f32
    %396 = vector.broadcast %cst_89 : f32 to vector<1x128xf32>
    %397 = arith.select %372, %396, %395 : vector<1x128xi1>, vector<1x128xf32>
    %398 = arith.mulf %397, %397 : vector<1x128xf32>
    %cst_90 = arith.constant 1.000000e+00 : f32
    %399 = vector.broadcast %cst_90 : f32 to vector<1x128xf32>
    %400 = arith.addf %398, %399 : vector<1x128xf32>
    %401 = math.rsqrt %400 : vector<1x128xf32>
    %402 = arith.mulf %397, %401 : vector<1x128xf32>
    %403 = arith.mulf %397, %351 : vector<1x128xf32>
    %404 = arith.subf %282, %403 : vector<1x128xf32>
    %405 = arith.mulf %397, %351 : vector<1x128xf32>
    %406 = arith.addf %344, %405 : vector<1x128xf32>
    %cst_91 = arith.constant 0.000000e+00 : f32
    %407 = vector.broadcast %cst_91 : f32 to vector<1x128xf32>
    %408 = arith.mulf %401, %348 : vector<1x128xf32>
    %409 = arith.mulf %402, %345 : vector<1x128xf32>
    %410 = arith.subf %408, %409 : vector<1x128xf32>
    %411 = arith.mulf %402, %348 : vector<1x128xf32>
    %412 = arith.mulf %401, %345 : vector<1x128xf32>
    %413 = arith.addf %411, %412 : vector<1x128xf32>
    %414 = arith.mulf %401, %295 : vector<1x128xf32>
    %415 = arith.mulf %402, %357 : vector<1x128xf32>
    %416 = arith.subf %414, %415 : vector<1x128xf32>
    %417 = arith.mulf %402, %295 : vector<1x128xf32>
    %418 = arith.mulf %401, %357 : vector<1x128xf32>
    %419 = arith.addf %417, %418 : vector<1x128xf32>
    %420 = arith.mulf %401, %301 : vector<1x128xf32>
    %421 = arith.mulf %402, %363 : vector<1x128xf32>
    %422 = arith.subf %420, %421 : vector<1x128xf32>
    %423 = arith.mulf %402, %301 : vector<1x128xf32>
    %424 = arith.mulf %401, %363 : vector<1x128xf32>
    %425 = arith.addf %423, %424 : vector<1x128xf32>
    %426 = arith.mulf %401, %307 : vector<1x128xf32>
    %427 = arith.mulf %402, %369 : vector<1x128xf32>
    %428 = arith.subf %426, %427 : vector<1x128xf32>
    %429 = arith.mulf %402, %307 : vector<1x128xf32>
    %430 = arith.mulf %401, %369 : vector<1x128xf32>
    %431 = arith.addf %429, %430 : vector<1x128xf32>
    %432 = math.absf %410 : vector<1x128xf32>
    %cst_92 = arith.constant 1.000000e-30 : f32
    %433 = vector.broadcast %cst_92 : f32 to vector<1x128xf32>
    %434 = arith.cmpf olt, %432, %433 : vector<1x128xf32>
    %cst_93 = arith.constant 2.000000e+00 : f32
    %435 = vector.broadcast %cst_93 : f32 to vector<1x128xf32>
    %436 = arith.mulf %435, %410 : vector<1x128xf32>
    %cst_94 = arith.constant 1.000000e+00 : f32
    %437 = vector.broadcast %cst_94 : f32 to vector<1x128xf32>
    %438 = arith.select %434, %437, %436 : vector<1x128xi1>, vector<1x128xf32>
    %439 = arith.subf %404, %342 : vector<1x128xf32>
    %440 = tpu.reciprocal %438 {approx = true} : vector<1x128xf32> -> vector<1x128xf32>
    %441 = arith.mulf %439, %440 : vector<1x128xf32>
    %cst_95 = arith.constant -9.99999986E+14 : f32
    %cst_96 = arith.constant 9.99999986E+14 : f32
    %442 = vector.broadcast %cst_95 : f32 to vector<1x128xf32>
    %443 = arith.maximumf %442, %441 : vector<1x128xf32>
    %444 = vector.broadcast %cst_96 : f32 to vector<1x128xf32>
    %445 = arith.minimumf %444, %443 : vector<1x128xf32>
    %446 = math.absf %445 : vector<1x128xf32>
    %cst_97 = arith.constant 0.000000e+00 : f32
    %447 = vector.broadcast %cst_97 : f32 to vector<1x128xf32>
    %448 = arith.cmpf oge, %445, %447 : vector<1x128xf32>
    %cst_98 = arith.constant 1.000000e+00 : f32
    %cst_99 = arith.constant -1.000000e+00 : f32
    %449 = vector.broadcast %cst_98 : f32 to vector<1x128xf32>
    %450 = vector.broadcast %cst_99 : f32 to vector<1x128xf32>
    %451 = arith.select %448, %449, %450 : vector<1x128xi1>, vector<1x128xf32>
    %452 = arith.mulf %445, %445 : vector<1x128xf32>
    %cst_100 = arith.constant 1.000000e+00 : f32
    %453 = vector.broadcast %cst_100 : f32 to vector<1x128xf32>
    %454 = arith.addf %452, %453 : vector<1x128xf32>
    %455 = math.sqrt %454 : vector<1x128xf32>
    %456 = arith.subf %455, %446 : vector<1x128xf32>
    %457 = arith.mulf %451, %456 : vector<1x128xf32>
    %cst_101 = arith.constant 0.000000e+00 : f32
    %458 = vector.broadcast %cst_101 : f32 to vector<1x128xf32>
    %459 = arith.select %434, %458, %457 : vector<1x128xi1>, vector<1x128xf32>
    %460 = arith.mulf %459, %459 : vector<1x128xf32>
    %cst_102 = arith.constant 1.000000e+00 : f32
    %461 = vector.broadcast %cst_102 : f32 to vector<1x128xf32>
    %462 = arith.addf %460, %461 : vector<1x128xf32>
    %463 = math.rsqrt %462 : vector<1x128xf32>
    %464 = arith.mulf %459, %463 : vector<1x128xf32>
    %465 = arith.mulf %459, %410 : vector<1x128xf32>
    %466 = arith.subf %342, %465 : vector<1x128xf32>
    %467 = arith.mulf %459, %410 : vector<1x128xf32>
    %468 = arith.addf %404, %467 : vector<1x128xf32>
    %cst_103 = arith.constant 0.000000e+00 : f32
    %469 = vector.broadcast %cst_103 : f32 to vector<1x128xf32>
    %470 = arith.mulf %463, %413 : vector<1x128xf32>
    %471 = arith.mulf %464, %407 : vector<1x128xf32>
    %472 = arith.subf %470, %471 : vector<1x128xf32>
    %473 = arith.mulf %464, %413 : vector<1x128xf32>
    %474 = arith.mulf %463, %407 : vector<1x128xf32>
    %475 = arith.addf %473, %474 : vector<1x128xf32>
    %476 = arith.mulf %463, %354 : vector<1x128xf32>
    %477 = arith.mulf %464, %416 : vector<1x128xf32>
    %478 = arith.subf %476, %477 : vector<1x128xf32>
    %479 = arith.mulf %464, %354 : vector<1x128xf32>
    %480 = arith.mulf %463, %416 : vector<1x128xf32>
    %481 = arith.addf %479, %480 : vector<1x128xf32>
    %482 = arith.mulf %463, %360 : vector<1x128xf32>
    %483 = arith.mulf %464, %422 : vector<1x128xf32>
    %484 = arith.subf %482, %483 : vector<1x128xf32>
    %485 = arith.mulf %464, %360 : vector<1x128xf32>
    %486 = arith.mulf %463, %422 : vector<1x128xf32>
    %487 = arith.addf %485, %486 : vector<1x128xf32>
    %488 = arith.mulf %463, %366 : vector<1x128xf32>
    %489 = arith.mulf %464, %428 : vector<1x128xf32>
    %490 = arith.subf %488, %489 : vector<1x128xf32>
    %491 = arith.mulf %464, %366 : vector<1x128xf32>
    %492 = arith.mulf %463, %428 : vector<1x128xf32>
    %493 = arith.addf %491, %492 : vector<1x128xf32>
    %494 = math.absf %472 : vector<1x128xf32>
    %cst_104 = arith.constant 1.000000e-30 : f32
    %495 = vector.broadcast %cst_104 : f32 to vector<1x128xf32>
    %496 = arith.cmpf olt, %494, %495 : vector<1x128xf32>
    %cst_105 = arith.constant 2.000000e+00 : f32
    %497 = vector.broadcast %cst_105 : f32 to vector<1x128xf32>
    %498 = arith.mulf %497, %472 : vector<1x128xf32>
    %cst_106 = arith.constant 1.000000e+00 : f32
    %499 = vector.broadcast %cst_106 : f32 to vector<1x128xf32>
    %500 = arith.select %496, %499, %498 : vector<1x128xi1>, vector<1x128xf32>
    %501 = arith.subf %406, %466 : vector<1x128xf32>
    %502 = tpu.reciprocal %500 {approx = true} : vector<1x128xf32> -> vector<1x128xf32>
    %503 = arith.mulf %501, %502 : vector<1x128xf32>
    %cst_107 = arith.constant -9.99999986E+14 : f32
    %cst_108 = arith.constant 9.99999986E+14 : f32
    %504 = vector.broadcast %cst_107 : f32 to vector<1x128xf32>
    %505 = arith.maximumf %504, %503 : vector<1x128xf32>
    %506 = vector.broadcast %cst_108 : f32 to vector<1x128xf32>
    %507 = arith.minimumf %506, %505 : vector<1x128xf32>
    %508 = math.absf %507 : vector<1x128xf32>
    %cst_109 = arith.constant 0.000000e+00 : f32
    %509 = vector.broadcast %cst_109 : f32 to vector<1x128xf32>
    %510 = arith.cmpf oge, %507, %509 : vector<1x128xf32>
    %cst_110 = arith.constant 1.000000e+00 : f32
    %cst_111 = arith.constant -1.000000e+00 : f32
    %511 = vector.broadcast %cst_110 : f32 to vector<1x128xf32>
    %512 = vector.broadcast %cst_111 : f32 to vector<1x128xf32>
    %513 = arith.select %510, %511, %512 : vector<1x128xi1>, vector<1x128xf32>
    %514 = arith.mulf %507, %507 : vector<1x128xf32>
    %cst_112 = arith.constant 1.000000e+00 : f32
    %515 = vector.broadcast %cst_112 : f32 to vector<1x128xf32>
    %516 = arith.addf %514, %515 : vector<1x128xf32>
    %517 = math.sqrt %516 : vector<1x128xf32>
    %518 = arith.subf %517, %508 : vector<1x128xf32>
    %519 = arith.mulf %513, %518 : vector<1x128xf32>
    %cst_113 = arith.constant 0.000000e+00 : f32
    %520 = vector.broadcast %cst_113 : f32 to vector<1x128xf32>
    %521 = arith.select %496, %520, %519 : vector<1x128xi1>, vector<1x128xf32>
    %522 = arith.mulf %521, %521 : vector<1x128xf32>
    %cst_114 = arith.constant 1.000000e+00 : f32
    %523 = vector.broadcast %cst_114 : f32 to vector<1x128xf32>
    %524 = arith.addf %522, %523 : vector<1x128xf32>
    %525 = math.rsqrt %524 : vector<1x128xf32>
    %526 = arith.mulf %521, %525 : vector<1x128xf32>
    %527 = arith.mulf %521, %472 : vector<1x128xf32>
    %528 = arith.subf %466, %527 : vector<1x128xf32>
    %529 = arith.mulf %521, %472 : vector<1x128xf32>
    %530 = arith.addf %406, %529 : vector<1x128xf32>
    %531 = arith.mulf %526, %469 : vector<1x128xf32>
    %532 = arith.mulf %525, %475 : vector<1x128xf32>
    %533 = arith.addf %531, %532 : vector<1x128xf32>
    %534 = arith.mulf %525, %478 : vector<1x128xf32>
    %535 = arith.mulf %526, %419 : vector<1x128xf32>
    %536 = arith.subf %534, %535 : vector<1x128xf32>
    %537 = arith.mulf %526, %478 : vector<1x128xf32>
    %538 = arith.mulf %525, %419 : vector<1x128xf32>
    %539 = arith.addf %537, %538 : vector<1x128xf32>
    %540 = arith.mulf %525, %484 : vector<1x128xf32>
    %541 = arith.mulf %526, %425 : vector<1x128xf32>
    %542 = arith.subf %540, %541 : vector<1x128xf32>
    %543 = arith.mulf %526, %484 : vector<1x128xf32>
    %544 = arith.mulf %525, %425 : vector<1x128xf32>
    %545 = arith.addf %543, %544 : vector<1x128xf32>
    %546 = arith.mulf %525, %490 : vector<1x128xf32>
    %547 = arith.mulf %526, %431 : vector<1x128xf32>
    %548 = arith.subf %546, %547 : vector<1x128xf32>
    %549 = arith.mulf %526, %490 : vector<1x128xf32>
    %550 = arith.mulf %525, %431 : vector<1x128xf32>
    %551 = arith.addf %549, %550 : vector<1x128xf32>
    %552 = math.absf %533 : vector<1x128xf32>
    %cst_115 = arith.constant 1.000000e-30 : f32
    %553 = vector.broadcast %cst_115 : f32 to vector<1x128xf32>
    %554 = arith.cmpf olt, %552, %553 : vector<1x128xf32>
    %cst_116 = arith.constant 2.000000e+00 : f32
    %555 = vector.broadcast %cst_116 : f32 to vector<1x128xf32>
    %556 = arith.mulf %555, %533 : vector<1x128xf32>
    %cst_117 = arith.constant 1.000000e+00 : f32
    %557 = vector.broadcast %cst_117 : f32 to vector<1x128xf32>
    %558 = arith.select %554, %557, %556 : vector<1x128xi1>, vector<1x128xf32>
    %559 = arith.subf %530, %468 : vector<1x128xf32>
    %560 = tpu.reciprocal %558 {approx = true} : vector<1x128xf32> -> vector<1x128xf32>
    %561 = arith.mulf %559, %560 : vector<1x128xf32>
    %cst_118 = arith.constant -9.99999986E+14 : f32
    %cst_119 = arith.constant 9.99999986E+14 : f32
    %562 = vector.broadcast %cst_118 : f32 to vector<1x128xf32>
    %563 = arith.maximumf %562, %561 : vector<1x128xf32>
    %564 = vector.broadcast %cst_119 : f32 to vector<1x128xf32>
    %565 = arith.minimumf %564, %563 : vector<1x128xf32>
    %566 = math.absf %565 : vector<1x128xf32>
    %cst_120 = arith.constant 0.000000e+00 : f32
    %567 = vector.broadcast %cst_120 : f32 to vector<1x128xf32>
    %568 = arith.cmpf oge, %565, %567 : vector<1x128xf32>
    %cst_121 = arith.constant 1.000000e+00 : f32
    %cst_122 = arith.constant -1.000000e+00 : f32
    %569 = vector.broadcast %cst_121 : f32 to vector<1x128xf32>
    %570 = vector.broadcast %cst_122 : f32 to vector<1x128xf32>
    %571 = arith.select %568, %569, %570 : vector<1x128xi1>, vector<1x128xf32>
    %572 = arith.mulf %565, %565 : vector<1x128xf32>
    %cst_123 = arith.constant 1.000000e+00 : f32
    %573 = vector.broadcast %cst_123 : f32 to vector<1x128xf32>
    %574 = arith.addf %572, %573 : vector<1x128xf32>
    %575 = math.sqrt %574 : vector<1x128xf32>
    %576 = arith.subf %575, %566 : vector<1x128xf32>
    %577 = arith.mulf %571, %576 : vector<1x128xf32>
    %cst_124 = arith.constant 0.000000e+00 : f32
    %578 = vector.broadcast %cst_124 : f32 to vector<1x128xf32>
    %579 = arith.select %554, %578, %577 : vector<1x128xi1>, vector<1x128xf32>
    %580 = arith.mulf %579, %579 : vector<1x128xf32>
    %cst_125 = arith.constant 1.000000e+00 : f32
    %581 = vector.broadcast %cst_125 : f32 to vector<1x128xf32>
    %582 = arith.addf %580, %581 : vector<1x128xf32>
    %583 = math.rsqrt %582 : vector<1x128xf32>
    %584 = arith.mulf %579, %583 : vector<1x128xf32>
    %585 = arith.mulf %579, %533 : vector<1x128xf32>
    %586 = arith.subf %468, %585 : vector<1x128xf32>
    %587 = arith.mulf %579, %533 : vector<1x128xf32>
    %588 = arith.addf %530, %587 : vector<1x128xf32>
    %589 = arith.mulf %583, %481 : vector<1x128xf32>
    %590 = arith.mulf %584, %539 : vector<1x128xf32>
    %591 = arith.subf %589, %590 : vector<1x128xf32>
    %592 = arith.mulf %584, %481 : vector<1x128xf32>
    %593 = arith.mulf %583, %539 : vector<1x128xf32>
    %594 = arith.addf %592, %593 : vector<1x128xf32>
    %595 = arith.mulf %583, %487 : vector<1x128xf32>
    %596 = arith.mulf %584, %545 : vector<1x128xf32>
    %597 = arith.subf %595, %596 : vector<1x128xf32>
    %598 = arith.mulf %584, %487 : vector<1x128xf32>
    %599 = arith.mulf %583, %545 : vector<1x128xf32>
    %600 = arith.addf %598, %599 : vector<1x128xf32>
    %601 = arith.mulf %583, %493 : vector<1x128xf32>
    %602 = arith.mulf %584, %551 : vector<1x128xf32>
    %603 = arith.subf %601, %602 : vector<1x128xf32>
    %604 = arith.mulf %584, %493 : vector<1x128xf32>
    %605 = arith.mulf %583, %551 : vector<1x128xf32>
    %606 = arith.addf %604, %605 : vector<1x128xf32>
    %607 = arith.maximumf %528, %586 : vector<1x128xf32>
    %608 = arith.maximumf %607, %588 : vector<1x128xf32>
    %609 = arith.minimumf %528, %586 : vector<1x128xf32>
    %610 = arith.minimumf %609, %588 : vector<1x128xf32>
    %611 = arith.addf %528, %586 : vector<1x128xf32>
    %612 = arith.addf %611, %588 : vector<1x128xf32>
    %613 = arith.subf %612, %608 : vector<1x128xf32>
    %614 = arith.subf %613, %610 : vector<1x128xf32>
    %615 = arith.cmpf oge, %528, %586 : vector<1x128xf32>
    %616 = arith.cmpf oge, %528, %588 : vector<1x128xf32>
    %617 = arith.andi %615, %616 : vector<1x128xi1>
    %cst_126 = arith.constant dense<true> : vector<1x128xi1>
    %618 = arith.xori %617, %cst_126 : vector<1x128xi1>
    %619 = arith.cmpf oge, %586, %588 : vector<1x128xf32>
    %620 = arith.andi %618, %619 : vector<1x128xi1>
    %621 = arith.select %620, %591, %594 : vector<1x128xi1>, vector<1x128xf32>
    %622 = arith.select %617, %536, %621 : vector<1x128xi1>, vector<1x128xf32>
    %623 = arith.select %620, %597, %600 : vector<1x128xi1>, vector<1x128xf32>
    %624 = arith.select %617, %542, %623 : vector<1x128xi1>, vector<1x128xf32>
    %625 = arith.select %620, %603, %606 : vector<1x128xi1>, vector<1x128xf32>
    %626 = arith.select %617, %548, %625 : vector<1x128xi1>, vector<1x128xf32>
    %cst_127 = arith.constant 1.000000e-30 : f32
    %627 = vector.broadcast %cst_127 : f32 to vector<1x128xf32>
    %628 = arith.maximumf %608, %627 : vector<1x128xf32>
    %629 = tpu.reciprocal %628 {approx = true} : vector<1x128xf32> -> vector<1x128xf32>
    %630 = arith.mulf %628, %629 : vector<1x128xf32>
    %cst_128 = arith.constant 2.000000e+00 : f32
    %631 = vector.broadcast %cst_128 : f32 to vector<1x128xf32>
    %632 = arith.subf %631, %630 : vector<1x128xf32>
    %633 = arith.mulf %629, %632 : vector<1x128xf32>
    %634 = arith.mulf %614, %633 : vector<1x128xf32>
    %cst_129 = arith.constant 1.000000e+00 : f32
    %635 = vector.broadcast %cst_129 : f32 to vector<1x128xf32>
    %636 = arith.subf %635, %634 : vector<1x128xf32>
    %637 = vector.broadcast %622 : vector<1x128xf32> to vector<24x128xf32>
    %638 = arith.mulf %637, %21 : vector<24x128xf32>
    %639 = vector.broadcast %624 : vector<1x128xf32> to vector<24x128xf32>
    %640 = arith.mulf %639, %29 : vector<24x128xf32>
    %641 = arith.addf %638, %640 : vector<24x128xf32>
    %642 = vector.broadcast %626 : vector<1x128xf32> to vector<24x128xf32>
    %643 = arith.mulf %642, %37 : vector<24x128xf32>
    %644 = arith.addf %641, %643 : vector<24x128xf32>
    %645 = arith.mulf %644, %644 : vector<24x128xf32>
    %646 = arith.subf %42, %645 : vector<24x128xf32>
    %cst_130 = arith.constant 0.000000e+00 : f32
    %647 = vector.broadcast %cst_130 : f32 to vector<24x128xf32>
    %648 = arith.maximumf %646, %647 : vector<24x128xf32>
    %649 = math.sqrt %648 : vector<24x128xf32>
    %650 = arith.mulf %644, %649 : vector<24x128xf32>
    %cst_131 = arith.constant dense<0.000000e+00> : vector<128xf32>
    %651 = vector.multi_reduction <add>, %650, %cst_131 [0] : vector<24x128xf32> to vector<128xf32>
    %652 = vector.shape_cast %651 : vector<128xf32> to vector<1x128xf32>
    %cst_132 = arith.constant 0.000000e+00 : f32
    %653 = vector.broadcast %cst_132 : f32 to vector<1x128xf32>
    %654 = arith.cmpf olt, %652, %653 : vector<1x128xf32>
    %cst_133 = arith.constant -1.000000e+00 : f32
    %cst_134 = arith.constant 1.000000e+00 : f32
    %655 = vector.broadcast %cst_133 : f32 to vector<1x128xf32>
    %656 = vector.broadcast %cst_134 : f32 to vector<1x128xf32>
    %657 = arith.select %654, %655, %656 : vector<1x128xi1>, vector<1x128xf32>
    %cst_135 = arith.constant 2.000000e+00 : f32
    %658 = vector.broadcast %cst_135 : f32 to vector<1x128xf32>
    %659 = arith.cmpf oge, %0, %658 : vector<1x128xf32>
    %660 = arith.mulf %44, %633 : vector<1x128xf32>
    %cst_136 = arith.constant 0.000000e+00 : f32
    %661 = vector.broadcast %cst_136 : f32 to vector<1x128xf32>
    %662 = arith.select %659, %660, %661 : vector<1x128xi1>, vector<1x128xf32>
    %663 = arith.mulf %51, %633 : vector<1x128xf32>
    %cst_137 = arith.constant 0.000000e+00 : f32
    %664 = vector.broadcast %cst_137 : f32 to vector<1x128xf32>
    %665 = arith.select %659, %663, %664 : vector<1x128xi1>, vector<1x128xf32>
    %666 = arith.mulf %54, %633 : vector<1x128xf32>
    %cst_138 = arith.constant 0.000000e+00 : f32
    %667 = vector.broadcast %cst_138 : f32 to vector<1x128xf32>
    %668 = arith.select %659, %666, %667 : vector<1x128xi1>, vector<1x128xf32>
    %669 = arith.mulf %51, %633 : vector<1x128xf32>
    %cst_139 = arith.constant 0.000000e+00 : f32
    %670 = vector.broadcast %cst_139 : f32 to vector<1x128xf32>
    %671 = arith.select %659, %669, %670 : vector<1x128xi1>, vector<1x128xf32>
    %672 = arith.mulf %46, %633 : vector<1x128xf32>
    %cst_140 = arith.constant 0.000000e+00 : f32
    %673 = vector.broadcast %cst_140 : f32 to vector<1x128xf32>
    %674 = arith.select %659, %672, %673 : vector<1x128xi1>, vector<1x128xf32>
    %675 = arith.mulf %57, %633 : vector<1x128xf32>
    %cst_141 = arith.constant 0.000000e+00 : f32
    %676 = vector.broadcast %cst_141 : f32 to vector<1x128xf32>
    %677 = arith.select %659, %675, %676 : vector<1x128xi1>, vector<1x128xf32>
    %678 = arith.mulf %54, %633 : vector<1x128xf32>
    %cst_142 = arith.constant 0.000000e+00 : f32
    %679 = vector.broadcast %cst_142 : f32 to vector<1x128xf32>
    %680 = arith.select %659, %678, %679 : vector<1x128xi1>, vector<1x128xf32>
    %681 = arith.mulf %57, %633 : vector<1x128xf32>
    %cst_143 = arith.constant 0.000000e+00 : f32
    %682 = vector.broadcast %cst_143 : f32 to vector<1x128xf32>
    %683 = arith.select %659, %681, %682 : vector<1x128xi1>, vector<1x128xf32>
    %684 = arith.mulf %48, %633 : vector<1x128xf32>
    %cst_144 = arith.constant 0.000000e+00 : f32
    %685 = vector.broadcast %cst_144 : f32 to vector<1x128xf32>
    %686 = arith.select %659, %684, %685 : vector<1x128xi1>, vector<1x128xf32>
    %687 = arith.mulf %657, %636 : vector<1x128xf32>
    %688 = arith.mulf %687, %622 : vector<1x128xf32>
    %cst_145 = arith.constant 0.000000e+00 : f32
    %689 = vector.broadcast %cst_145 : f32 to vector<1x128xf32>
    %690 = arith.select %659, %688, %689 : vector<1x128xi1>, vector<1x128xf32>
    %691 = arith.mulf %657, %636 : vector<1x128xf32>
    %692 = arith.mulf %691, %624 : vector<1x128xf32>
    %cst_146 = arith.constant 0.000000e+00 : f32
    %693 = vector.broadcast %cst_146 : f32 to vector<1x128xf32>
    %694 = arith.select %659, %692, %693 : vector<1x128xi1>, vector<1x128xf32>
    %695 = arith.mulf %657, %636 : vector<1x128xf32>
    %696 = arith.mulf %695, %626 : vector<1x128xf32>
    %cst_147 = arith.constant 0.000000e+00 : f32
    %697 = vector.broadcast %cst_147 : f32 to vector<1x128xf32>
    %698 = arith.select %659, %696, %697 : vector<1x128xi1>, vector<1x128xf32>
    %699 = tpu.concatenate %18, %26, %34, %662, %665, %668, %671, %674, %677, %680, %683, %686, %690, %694, %698, %0 in 0 : vector<1x128xf32>, vector<1x128xf32>, vector<1x128xf32>, vector<1x128xf32>, vector<1x128xf32>, vector<1x128xf32>, vector<1x128xf32>, vector<1x128xf32>, vector<1x128xf32>, vector<1x128xf32>, vector<1x128xf32>, vector<1x128xf32>, vector<1x128xf32>, vector<1x128xf32>, vector<1x128xf32>, vector<1x128xf32> -> vector<16x128xf32>
    %c0_148 = arith.constant 0 : index
    %c0_149 = arith.constant 0 : index
    %700 = vector.load %arg3[%c0_148, %c0_149] : memref<16x128xf32, #tpu.memory_space<vmem>>, vector<16x128xf32>
    tpu.vector_store %arg3[%c0_148, %c0_149], %699 {strides = array<i32>} : memref<16x128xf32, #tpu.memory_space<vmem>>, vector<16x128xf32>,
    return
  }
  func.func @transform_0(%arg0: i32) -> (i32, i32, i32) {
    %c0_i32 = arith.constant 0 : i32
    %c0_i32_0 = arith.constant 0 : i32
    %c0_i32_1 = arith.constant 0 : i32
    return %c0_i32, %c0_i32_0, %arg0 : i32, i32, i32
  }
  func.func @transform_1(%arg0: i32) -> (i32, i32) {
    %c0_i32 = arith.constant 0 : i32
    %c0_i32_0 = arith.constant 0 : i32
    return %c0_i32, %arg0 : i32, i32
  }
  func.func @transform_2(%arg0: i32) -> (i32, i32) {
    %c0_i32 = arith.constant 0 : i32
    %c0_i32_0 = arith.constant 0 : i32
    return %c0_i32, %arg0 : i32, i32
  }
}

</mosaic_0001>

<llo_original>
// kernel: tpu_custom_call.1
$region0: #{tpu_custom_call.1}
  #allocation0 [shape = 'u32[]', space=smem, size = 0x4, offset = 0x4, fixed_abs, tag = 'smem constant byte address 0x4 - core index']
  #allocation1 [shape = 'u32[144,128]{1,0:T(1,128)}', space=vmem, size = 0x12000, scoped, tag = 'internal scratch']
  %s0 = inlined_call_operand.hbm [shape: f32[3,24,128], index: 0, kind: input, shape index: {}]
  %s1 = inlined_call_operand.vmem [shape: f32[1,128], index: 1, kind: input, shape index: {}]
  %s2 = inlined_call_operand.hbm [shape: f32[16,128], index: 2, kind: output, shape index: {}]
  %s3 = sld [smem:[#allocation0]]
  $region22: #{tpu_custom_call.1} parent=0
    _
  %s5 = ssub.s32 1, %s3
  %s6 = scalar_select 0, %s5, %s3
  $region1: #{tpu_custom_call.1} parent=0
    #allocation2 [shape = 'u8[36864]{0}', space=vmem, size = 0x9000, scoped, tag = 'input window, operand 0, single buffered']
    #allocation3 [shape = 's32[1]{0}', space=sflag, size = 0x4, scoped, tag = 'scoped memory for tpu_custom_call.1']
    #allocation4 [shape = 's32[1]{0}', space=sflag, size = 0x4, scoped, tag = 'scoped memory for tpu_custom_call.1']
    #allocation5 [shape = 'u8[8192]{0}', space=vmem, size = 0x2000, scoped, tag = 'output window, operand 0, single buffered']
    %7 = vsyncpa [#allocation3], 0
    %8 = vsyncpa [#allocation4], 0
    // Predicated region
    $region2: #{tpu_custom_call.1} parent=1 // pred_check
      _
    $region3: #{tpu_custom_call.1} parent=1 // pred_check_branch
      %10 = sbr.rel (0) target = $region5
    $region4: #{tpu_custom_call.1} parent=1 // pred_region
      %s12 = ssub.s32 1152, 1152
      %13 = vsyncadd [#allocation3], %s12
      %s14 = sshll.u32 [#allocation2], 4
      %s15 = int_to_ptr.vmem [resolvable:$true] %s14
      %20 = dma.hbm_to_vmem [thread:$0]  %s0, 1152, %s15, [#allocation3], 128, 128, 8
    $region5: #{tpu_custom_call.1} parent=1 // pred_fallthru
      _
    // Predicated region
    $region6: #{tpu_custom_call.1} parent=1 // pred_check
      _
    $region7: #{tpu_custom_call.1} parent=1 // pred_check_branch
      %22 = sbr.rel (0) target = $region9
    $region8: #{tpu_custom_call.1} parent=1 // pred_region
      _
    $region9: #{tpu_custom_call.1} parent=1 // pred_fallthru
      _
    // Predicated region
    $region10: #{tpu_custom_call.1} parent=1 // pred_check
      _
    $region11: #{tpu_custom_call.1} parent=1 // pred_check_branch
      %24 = sbr.rel (0) target = $region13
    $region12: #{tpu_custom_call.1} parent=1 // pred_region
      %25 = dma.done [#allocation3], 1152
    $region13: #{tpu_custom_call.1} parent=1 // pred_fallthru
      _
    %v26 = vld [vmem:[%s1] sm:$0x1]
    %v27 = vmax.f32 %v26, 1.0
    %v28 = vrcp.pop %v27
    %v29 = vmul.f32 %v27, %v28
    %v30 = vsub.f32 2.0, %v29
    %v31 = vmul.f32 %v28, %v30
    %v32 = vlaneseq
    %v33 = vshrl.u32 %v32, 7
    %v34 = vadd.s32 %v33, 8
    %v35 = vadd.s32 %v33, 16
    %v36 = vcvt.f32.s32.to.zero.pseudo %v26
    %v37 = vlaneseq
    %v38 = vshrl.u32 %v37, 7
    %v39 = vsub.s32 0, %v38
    %v40 = vrot.slane %v36, %v39
    %vm41 = vcmp.lt.s32.totalorder %v33, %v40
    %vm42 = vcmp.lt.s32.totalorder %v34, %v40
    %vm43 = vcmp.lt.s32.totalorder %v35, %v40
    %v44 = vsel %vm41, 1, 0
    %v45 = vsel %vm42, 1, 0
    %v46 = vsel %vm43, 1, 0
    %v47 = vcvt.s32.f32 %v44
    %v48 = vcvt.s32.f32 %v45
    %v49 = vcvt.s32.f32 %v46
    %v50 = vld [vmem:[#allocation2] sm:$0xff]
    %v51 = vld [vmem:[#allocation2 + $0x8] sm:$0xff]
    %v52 = vld [vmem:[#allocation2 + $0x10] sm:$0xff]
    %v53 = vadd.f32 %v50, %v51
    %v54 = vadd.f32 %v53, %v52
    %v55 = vrot.slane %v54, 4
    %v56 = vadd.f32 %v54, %v55
    %v57 = vrot.slane %v56, 2
    %v58 = vadd.f32 %v56, %v57
    %v59 = vrot.slane %v58, 1
    %v60 = vadd.f32 %v58, %v59
    %v61 = vmul.f32 %v60, %v31
    %v62 = vlaneseq
    %v63 = vshrl.u32 %v62, 7
    %v64 = vsub.s32 0, %v63
    %v65 = vrot.slane %v61, %v64
    %v66 = vsub.f32 %v50, %v65
    %v67 = vsub.f32 %v51, %v65
    %v68 = vsub.f32 %v52, %v65
    %v69 = vmul.f32 %v66, %v47
    %v70 = vmul.f32 %v67, %v48
    %v71 = vmul.f32 %v68, %v49
    %s72 = scalar_lea.vmem [#allocation2], 24
    %v73 = vld [vmem:[%s72] sm:$0xff]
    %v74 = vld [vmem:[%s72 + $0x8] sm:$0xff]
    %v75 = vld [vmem:[%s72 + $0x10] sm:$0xff]
    %v76 = vadd.f32 %v73, %v74
    %v77 = vadd.f32 %v76, %v75
    %v78 = vrot.slane %v77, 4
    %v79 = vadd.f32 %v77, %v78
    %v80 = vrot.slane %v79, 2
    %v81 = vadd.f32 %v79, %v80
    %v82 = vrot.slane %v81, 1
    %v83 = vadd.f32 %v81, %v82
    %v84 = vmul.f32 %v83, %v31
    %v85 = vlaneseq
    %v86 = vshrl.u32 %v85, 7
    %v87 = vsub.s32 0, %v86
    %v88 = vrot.slane %v84, %v87
    %v89 = vsub.f32 %v73, %v88
    %v90 = vsub.f32 %v74, %v88
    %v91 = vsub.f32 %v75, %v88
    %v92 = vmul.f32 %v89, %v47
    %v93 = vmul.f32 %v90, %v48
    %v94 = vmul.f32 %v91, %v49
    %s95 = scalar_lea.vmem [#allocation2], 48
    %v96 = vld [vmem:[%s95] sm:$0xff]
    %v97 = vld [vmem:[%s95 + $0x8] sm:$0xff]
    %v98 = vld [vmem:[%s95 + $0x10] sm:$0xff]
    %v99 = vadd.f32 %v96, %v97
    %v100 = vadd.f32 %v99, %v98
    %v101 = vrot.slane %v100, 4
    %v102 = vadd.f32 %v100, %v101
    %v103 = vrot.slane %v102, 2
    %v104 = vadd.f32 %v102, %v103
    %v105 = vrot.slane %v104, 1
    %v106 = vadd.f32 %v104, %v105
    %v107 = vmul.f32 %v106, %v31
    %v108 = vlaneseq
    %v109 = vshrl.u32 %v108, 7
    %v110 = vsub.s32 0, %v109
    %v111 = vrot.slane %v107, %v110
    %v112 = vsub.f32 %v96, %v111
    %v113 = vsub.f32 %v97, %v111
    %v114 = vsub.f32 %v98, %v111
    %v115 = vmul.f32 %v112, %v47
    %v116 = vmul.f32 %v113, %v48
    %v117 = vmul.f32 %v114, %v49
    %v118 = vmul.f32 %v69, %v69
    %v119 = vmul.f32 %v70, %v70
    %v120 = vmul.f32 %v71, %v71
    %v121 = vmul.f32 %v92, %v92
    %v122 = vmul.f32 %v93, %v93
    %v123 = vmul.f32 %v94, %v94
    %v124 = vmul.f32 %v115, %v115
    %v125 = vmul.f32 %v116, %v116
    %v126 = vmul.f32 %v117, %v117
    %v127 = vadd.f32 %v118, %v121
    %v128 = vadd.f32 %v119, %v122
    %v129 = vadd.f32 %v120, %v123
    %v130 = vadd.f32 %v127, %v124
    %v131 = vadd.f32 %v128, %v125
    %v132 = vadd.f32 %v129, %v126
    %v133 = vadd.f32 %v118, %v119
    %v134 = vadd.f32 %v133, %v120
    %v135 = vrot.slane %v134, 4
    %v136 = vadd.f32 %v134, %v135
    %v137 = vrot.slane %v136, 2
    %v138 = vadd.f32 %v136, %v137
    %v139 = vrot.slane %v138, 1
    %v140 = vadd.f32 %v138, %v139
    %v141 = vadd.f32 %v121, %v122
    %v142 = vadd.f32 %v141, %v123
    %v143 = vrot.slane %v142, 4
    %v144 = vadd.f32 %v142, %v143
    %v145 = vrot.slane %v144, 2
    %v146 = vadd.f32 %v144, %v145
    %v147 = vrot.slane %v146, 1
    %v148 = vadd.f32 %v146, %v147
    %v149 = vadd.f32 %v124, %v125
    %v150 = vadd.f32 %v149, %v126
    %v151 = vrot.slane %v150, 4
    %v152 = vadd.f32 %v150, %v151
    %v153 = vrot.slane %v152, 2
    %v154 = vadd.f32 %v152, %v153
    %v155 = vrot.slane %v154, 1
    %v156 = vadd.f32 %v154, %v155
    %v157 = vmul.f32 %v69, %v92
    %v158 = vmul.f32 %v70, %v93
    %v159 = vmul.f32 %v71, %v94
    %v160 = vadd.f32 %v157, %v158
    %v161 = vadd.f32 %v160, %v159
    %v162 = vrot.slane %v161, 4
    %v163 = vadd.f32 %v161, %v162
    %v164 = vrot.slane %v163, 2
    %v165 = vadd.f32 %v163, %v164
    %v166 = vrot.slane %v165, 1
    %v167 = vadd.f32 %v165, %v166
    %v168 = vmul.f32 %v69, %v115
    %v169 = vmul.f32 %v70, %v116
    %v170 = vmul.f32 %v71, %v117
    %v171 = vadd.f32 %v168, %v169
    %v172 = vadd.f32 %v171, %v170
    %v173 = vrot.slane %v172, 4
    %v174 = vadd.f32 %v172, %v173
    %v175 = vrot.slane %v174, 2
    %v176 = vadd.f32 %v174, %v175
    %v177 = vrot.slane %v176, 1
    %v178 = vadd.f32 %v176, %v177
    %v179 = vmul.f32 %v92, %v115
    %v180 = vmul.f32 %v93, %v116
    %v181 = vmul.f32 %v94, %v117
    %v182 = vadd.f32 %v179, %v180
    %v183 = vadd.f32 %v182, %v181
    %v184 = vrot.slane %v183, 4
    %v185 = vadd.f32 %v183, %v184
    %v186 = vrot.slane %v185, 2
    %v187 = vadd.f32 %v185, %v186
    %v188 = vrot.slane %v187, 1
    %v189 = vadd.f32 %v187, %v188
    %v190 = vand.u32 2147483647, %v167
    %vm191 = vcmp.lt.f32.partialorder %v190, 1e-30
    %v192 = vmul.f32 %v167, 2.0
    %v193 = vsel %vm191, 1.0, %v192
    %v194 = vsub.f32 %v148, %v140
    %v195 = vrcp.pop %v193
    %v196 = vmul.f32 %v194, %v195
    %v197 = vmax.f32 %v196, -1e+15
    %v198 = vmin.f32 %v197, 1e+15
    %v199 = vand.u32 2147483647, %v198
    %vm200 = vcmp.ge.f32.partialorder %v198, 0.0
    %v201 = vsel %vm200, 1.0, -1.0
    %v202 = vmul.f32 %v198, %v198
    %v203 = vadd.f32 %v202, 1.0
    %v204 = vrsqrt.pop %v203
    %v205 = vmul.f32 %v203, %v204
    %vm206 = vcmp.eq.f32.partialorder %v203, inf
    %v207 = vsel %vm206, %v203, %v205
    %vm208 = vcmp.eq.f32.partialorder %v203, 0.0
    %v209 = vand.u32 %v203, 2147483648
    %v210 = vsel %vm208, %v209, %v207
    %v211 = vsub.f32 %v210, %v199
    %v212 = vmul.f32 %v201, %v211
    %v213 = vsel %vm191, 0.0, %v212
    %v214 = vmul.f32 %v213, %v213
    %v215 = vadd.f32 %v214, 1.0
    %v216 = vrsqrt.pop %v215
    %v217 = vmul.f32 %v213, %v216
    %v218 = vmul.f32 %v213, %v167
    %v219 = vsub.f32 %v140, %v218
    %v220 = vadd.f32 %v148, %v218
    %v221 = vmul.f32 %v216, %v178
    %v222 = vmul.f32 %v217, %v189
    %v223 = vsub.f32 %v221, %v222
    %v224 = vmul.f32 %v217, %v178
    %v225 = vmul.f32 %v216, %v189
    %v226 = vadd.f32 %v224, %v225
    %v227 = vmul.f32 %v217, 0.0
    %v228 = vsub.f32 %v216, %v227
    %v229 = vmul.f32 %v216, 0.0
    %v230 = vadd.f32 %v217, %v229
    %v231 = vsub.f32 %v229, %v217
    %v232 = vadd.f32 %v227, %v216
    %v233 = vsub.f32 %v229, %v227
    %v234 = vadd.f32 %v227, %v229
    %v235 = vand.u32 2147483647, %v223
    %vm236 = vcmp.lt.f32.partialorder %v235, 1e-30
    %v237 = vmul.f32 %v223, 2.0
    %v238 = vsel %vm236, 1.0, %v237
    %v239 = vsub.f32 %v156, %v219
    %v240 = vrcp.pop %v238
    %v241 = vmul.f32 %v239, %v240
    %v242 = vmax.f32 %v241, -1e+15
    %v243 = vmin.f32 %v242, 1e+15
    %v244 = vand.u32 2147483647, %v243
    %vm245 = vcmp.ge.f32.partialorder %v243, 0.0
    %v246 = vsel %vm245, 1.0, -1.0
    %v247 = vmul.f32 %v243, %v243
    %v248 = vadd.f32 %v247, 1.0
    %v249 = vrsqrt.pop %v248
    %v250 = vmul.f32 %v248, %v249
    %vm251 = vcmp.eq.f32.partialorder %v248, inf
    %v252 = vsel %vm251, %v248, %v250
    %vm253 = vcmp.eq.f32.partialorder %v248, 0.0
    %v254 = vand.u32 %v248, 2147483648
    %v255 = vsel %vm253, %v254, %v252
    %v256 = vsub.f32 %v255, %v244
    %v257 = vmul.f32 %v246, %v256
    %v258 = vsel %vm236, 0.0, %v257
    %v259 = vmul.f32 %v258, %v258
    %v260 = vadd.f32 %v259, 1.0
    %v261 = vrsqrt.pop %v260
    %v262 = vmul.f32 %v258, %v261
    %v263 = vmul.f32 %v258, %v223
    %v264 = vsub.f32 %v219, %v263
    %v265 = vadd.f32 %v156, %v263
    %v266 = vmul.f32 %v261, 0.0
    %v267 = vmul.f32 %v262, %v226
    %v268 = vsub.f32 %v266, %v267
    %v269 = vmul.f32 %v262, 0.0
    %v270 = vmul.f32 %v261, %v226
    %v271 = vadd.f32 %v269, %v270
    %v272 = vmul.f32 %v261, %v228
    %v273 = vsub.f32 %v272, %v269
    %v274 = vmul.f32 %v262, %v228
    %v275 = vadd.f32 %v274, %v266
    %v276 = vmul.f32 %v261, %v231
    %v277 = vsub.f32 %v276, %v269
    %v278 = vmul.f32 %v262, %v231
    %v279 = vadd.f32 %v278, %v266
    %v280 = vmul.f32 %v261, %v233
    %v281 = vsub.f32 %v280, %v262
    %v282 = vmul.f32 %v262, %v233
    %v283 = vadd.f32 %v282, %v261
    %v284 = vand.u32 2147483647, %v271
    %vm285 = vcmp.lt.f32.partialorder %v284, 1e-30
    %v286 = vmul.f32 %v271, 2.0
    %v287 = vsel %vm285, 1.0, %v286
    %v288 = vsub.f32 %v265, %v220
    %v289 = vrcp.pop %v287
    %v290 = vmul.f32 %v288, %v289
    %v291 = vmax.f32 %v290, -1e+15
    %v292 = vmin.f32 %v291, 1e+15
    %v293 = vand.u32 2147483647, %v292
    %vm294 = vcmp.ge.f32.partialorder %v292, 0.0
    %v295 = vsel %vm294, 1.0, -1.0
    %v296 = vmul.f32 %v292, %v292
    %v297 = vadd.f32 %v296, 1.0
    %v298 = vrsqrt.pop %v297
    %v299 = vmul.f32 %v297, %v298
    %vm300 = vcmp.eq.f32.partialorder %v297, inf
    %v301 = vsel %vm300, %v297, %v299
    %vm302 = vcmp.eq.f32.partialorder %v297, 0.0
    %v303 = vand.u32 %v297, 2147483648
    %v304 = vsel %vm302, %v303, %v301
    %v305 = vsub.f32 %v304, %v293
    %v306 = vmul.f32 %v295, %v305
    %v307 = vsel %vm285, 0.0, %v306
    %v308 = vmul.f32 %v307, %v307
    %v309 = vadd.f32 %v308, 1.0
    %v310 = vrsqrt.pop %v309
    %v311 = vmul.f32 %v307, %v310
    %v312 = vmul.f32 %v307, %v271
    %v313 = vsub.f32 %v220, %v312
    %v314 = vadd.f32 %v265, %v312
    %v315 = vmul.f32 %v310, %v268
    %v316 = vmul.f32 %v311, 0.0
    %v317 = vsub.f32 %v315, %v316
    %v318 = vmul.f32 %v311, %v268
    %v319 = vmul.f32 %v310, 0.0
    %v320 = vadd.f32 %v318, %v319
    %v321 = vmul.f32 %v310, %v230
    %v322 = vmul.f32 %v311, %v275
    %v323 = vsub.f32 %v321, %v322
    %v324 = vmul.f32 %v311, %v230
    %v325 = vmul.f32 %v310, %v275
    %v326 = vadd.f32 %v324, %v325
    %v327 = vmul.f32 %v310, %v232
    %v328 = vmul.f32 %v311, %v279
    %v329 = vsub.f32 %v327, %v328
    %v330 = vmul.f32 %v311, %v232
    %v331 = vmul.f32 %v310, %v279
    %v332 = vadd.f32 %v330, %v331
    %v333 = vmul.f32 %v310, %v234
    %v334 = vmul.f32 %v311, %v283
    %v335 = vsub.f32 %v333, %v334
    %v336 = vmul.f32 %v311, %v234
    %v337 = vmul.f32 %v310, %v283
    %v338 = vadd.f32 %v336, %v337
    %v339 = vand.u32 2147483647, %v317
    %vm340 = vcmp.lt.f32.partialorder %v339, 1e-30
    %v341 = vmul.f32 %v317, 2.0
    %v342 = vsel %vm340, 1.0, %v341
    %v343 = vsub.f32 %v313, %v264
    %v344 = vrcp.pop %v342
    %v345 = vmul.f32 %v343, %v344
    %v346 = vmax.f32 %v345, -1e+15
    %v347 = vmin.f32 %v346, 1e+15
    %v348 = vand.u32 2147483647, %v347
    %vm349 = vcmp.ge.f32.partialorder %v347, 0.0
    %v350 = vsel %vm349, 1.0, -1.0
    %v351 = vmul.f32 %v347, %v347
    %v352 = vadd.f32 %v351, 1.0
    %v353 = vrsqrt.pop %v352
    %v354 = vmul.f32 %v352, %v353
    %vm355 = vcmp.eq.f32.partialorder %v352, inf
    %v356 = vsel %vm355, %v352, %v354
    %vm357 = vcmp.eq.f32.partialorder %v352, 0.0
    %v358 = vand.u32 %v352, 2147483648
    %v359 = vsel %vm357, %v358, %v356
    %v360 = vsub.f32 %v359, %v348
    %v361 = vmul.f32 %v350, %v360
    %v362 = vsel %vm340, 0.0, %v361
    %v363 = vmul.f32 %v362, %v362
    %v364 = vadd.f32 %v363, 1.0
    %v365 = vrsqrt.pop %v364
    %v366 = vmul.f32 %v362, %v365
    %v367 = vmul.f32 %v362, %v317
    %v368 = vsub.f32 %v264, %v367
    %v369 = vadd.f32 %v313, %v367
    %v370 = vmul.f32 %v365, %v320
    %v371 = vmul.f32 %v366, 0.0
    %v372 = vsub.f32 %v370, %v371
    %v373 = vmul.f32 %v366, %v320
    %v374 = vmul.f32 %v365, 0.0
    %v375 = vadd.f32 %v373, %v374
    %v376 = vmul.f32 %v365, %v273
    %v377 = vmul.f32 %v366, %v323
    %v378 = vsub.f32 %v376, %v377
    %v379 = vmul.f32 %v366, %v273
    %v380 = vmul.f32 %v365, %v323
    %v381 = vadd.f32 %v379, %v380
    %v382 = vmul.f32 %v365, %v277
    %v383 = vmul.f32 %v366, %v329
    %v384 = vsub.f32 %v382, %v383
    %v385 = vmul.f32 %v366, %v277
    %v386 = vmul.f32 %v365, %v329
    %v387 = vadd.f32 %v385, %v386
    %v388 = vmul.f32 %v365, %v281
    %v389 = vmul.f32 %v366, %v335
    %v390 = vsub.f32 %v388, %v389
    %v391 = vmul.f32 %v366, %v281
    %v392 = vmul.f32 %v365, %v335
    %v393 = vadd.f32 %v391, %v392
    %v394 = vand.u32 2147483647, %v372
    %vm395 = vcmp.lt.f32.partialorder %v394, 1e-30
    %v396 = vmul.f32 %v372, 2.0
    %v397 = vsel %vm395, 1.0, %v396
    %v398 = vsub.f32 %v314, %v368
    %v399 = vrcp.pop %v397
    %v400 = vmul.f32 %v398, %v399
    %v401 = vmax.f32 %v400, -1e+15
    %v402 = vmin.f32 %v401, 1e+15
    %v403 = vand.u32 2147483647, %v402
    %vm404 = vcmp.ge.f32.partialorder %v402, 0.0
    %v405 = vsel %vm404, 1.0, -1.0
    %v406 = vmul.f32 %v402, %v402
    %v407 = vadd.f32 %v406, 1.0
    %v408 = vrsqrt.pop %v407
    %v409 = vmul.f32 %v407, %v408
    %vm410 = vcmp.eq.f32.partialorder %v407, inf
    %v411 = vsel %vm410, %v407, %v409
    %vm412 = vcmp.eq.f32.partialorder %v407, 0.0
    %v413 = vand.u32 %v407, 2147483648
    %v414 = vsel %vm412, %v413, %v411
    %v415 = vsub.f32 %v414, %v403
    %v416 = vmul.f32 %v405, %v415
    %v417 = vsel %vm395, 0.0, %v416
    %v418 = vmul.f32 %v417, %v417
    %v419 = vadd.f32 %v418, 1.0
    %v420 = vrsqrt.pop %v419
    %v421 = vmul.f32 %v417, %v420
    %v422 = vmul.f32 %v417, %v372
    %v423 = vsub.f32 %v368, %v422
    %v424 = vadd.f32 %v314, %v422
    %v425 = vmul.f32 %v420, 0.0
    %v426 = vmul.f32 %v421, %v375
    %v427 = vsub.f32 %v425, %v426
    %v428 = vmul.f32 %v421, 0.0
    %v429 = vmul.f32 %v420, %v375
    %v430 = vadd.f32 %v428, %v429
    %v431 = vmul.f32 %v420, %v378
    %v432 = vmul.f32 %v421, %v326
    %v433 = vsub.f32 %v431, %v432
    %v434 = vmul.f32 %v421, %v378
    %v435 = vmul.f32 %v420, %v326
    %v436 = vadd.f32 %v434, %v435
    %v437 = vmul.f32 %v420, %v384
    %v438 = vmul.f32 %v421, %v332
    %v439 = vsub.f32 %v437, %v438
    %v440 = vmul.f32 %v421, %v384
    %v441 = vmul.f32 %v420, %v332
    %v442 = vadd.f32 %v440, %v441
    %v443 = vmul.f32 %v420, %v390
    %v444 = vmul.f32 %v421, %v338
    %v445 = vsub.f32 %v443, %v444
    %v446 = vmul.f32 %v421, %v390
    %v447 = vmul.f32 %v420, %v338
    %v448 = vadd.f32 %v446, %v447
    %v449 = vand.u32 2147483647, %v430
    %vm450 = vcmp.lt.f32.partialorder %v449, 1e-30
    %v451 = vmul.f32 %v430, 2.0
    %v452 = vsel %vm450, 1.0, %v451
    %v453 = vsub.f32 %v424, %v369
    %v454 = vrcp.pop %v452
    %v455 = vmul.f32 %v453, %v454
    %v456 = vmax.f32 %v455, -1e+15
    %v457 = vmin.f32 %v456, 1e+15
    %v458 = vand.u32 2147483647, %v457
    %vm459 = vcmp.ge.f32.partialorder %v457, 0.0
    %v460 = vsel %vm459, 1.0, -1.0
    %v461 = vmul.f32 %v457, %v457
    %v462 = vadd.f32 %v461, 1.0
    %v463 = vrsqrt.pop %v462
    %v464 = vmul.f32 %v462, %v463
    %vm465 = vcmp.eq.f32.partialorder %v462, inf
    %v466 = vsel %vm465, %v462, %v464
    %vm467 = vcmp.eq.f32.partialorder %v462, 0.0
    %v468 = vand.u32 %v462, 2147483648
    %v469 = vsel %vm467, %v468, %v466
    %v470 = vsub.f32 %v469, %v458
    %v471 = vmul.f32 %v460, %v470
    %v472 = vsel %vm450, 0.0, %v471
    %v473 = vmul.f32 %v472, %v472
    %v474 = vadd.f32 %v473, 1.0
    %v475 = vrsqrt.pop %v474
    %v476 = vmul.f32 %v472, %v475
    %v477 = vmul.f32 %v472, %v430
    %v478 = vsub.f32 %v369, %v477
    %v479 = vadd.f32 %v424, %v477
    %v480 = vmul.f32 %v475, %v427
    %v481 = vmul.f32 %v476, 0.0
    %v482 = vsub.f32 %v480, %v481
    %v483 = vmul.f32 %v476, %v427
    %v484 = vmul.f32 %v475, 0.0
    %v485 = vadd.f32 %v483, %v484
    %v486 = vmul.f32 %v475, %v381
    %v487 = vmul.f32 %v476, %v436
    %v488 = vsub.f32 %v486, %v487
    %v489 = vmul.f32 %v476, %v381
    %v490 = vmul.f32 %v475, %v436
    %v491 = vadd.f32 %v489, %v490
    %v492 = vmul.f32 %v475, %v387
    %v493 = vmul.f32 %v476, %v442
    %v494 = vsub.f32 %v492, %v493
    %v495 = vmul.f32 %v476, %v387
    %v496 = vmul.f32 %v475, %v442
    %v497 = vadd.f32 %v495, %v496
    %v498 = vmul.f32 %v475, %v393
    %v499 = vmul.f32 %v476, %v448
    %v500 = vsub.f32 %v498, %v499
    %v501 = vmul.f32 %v476, %v393
    %v502 = vmul.f32 %v475, %v448
    %v503 = vadd.f32 %v501, %v502
    %v504 = vand.u32 2147483647, %v482
    %vm505 = vcmp.lt.f32.partialorder %v504, 1e-30
    %v506 = vmul.f32 %v482, 2.0
    %v507 = vsel %vm505, 1.0, %v506
    %v508 = vsub.f32 %v478, %v423
    %v509 = vrcp.pop %v507
    %v510 = vmul.f32 %v508, %v509
    %v511 = vmax.f32 %v510, -1e+15
    %v512 = vmin.f32 %v511, 1e+15
    %v513 = vand.u32 2147483647, %v512
    %vm514 = vcmp.ge.f32.partialorder %v512, 0.0
    %v515 = vsel %vm514, 1.0, -1.0
    %v516 = vmul.f32 %v512, %v512
    %v517 = vadd.f32 %v516, 1.0
    %v518 = vrsqrt.pop %v517
    %v519 = vmul.f32 %v517, %v518
    %vm520 = vcmp.eq.f32.partialorder %v517, inf
    %v521 = vsel %vm520, %v517, %v519
    %vm522 = vcmp.eq.f32.partialorder %v517, 0.0
    %v523 = vand.u32 %v517, 2147483648
    %v524 = vsel %vm522, %v523, %v521
    %v525 = vsub.f32 %v524, %v513
    %v526 = vmul.f32 %v515, %v525
    %v527 = vsel %vm505, 0.0, %v526
    %v528 = vmul.f32 %v527, %v527
    %v529 = vadd.f32 %v528, 1.0
    %v530 = vrsqrt.pop %v529
    %v531 = vmul.f32 %v527, %v530
    %v532 = vmul.f32 %v527, %v482
    %v533 = vsub.f32 %v423, %v532
    %v534 = vadd.f32 %v478, %v532
    %v535 = vmul.f32 %v530, %v485
    %v536 = vmul.f32 %v531, 0.0
    %v537 = vsub.f32 %v535, %v536
    %v538 = vmul.f32 %v531, %v485
    %v539 = vmul.f32 %v530, 0.0
    %v540 = vadd.f32 %v538, %v539
    %v541 = vmul.f32 %v530, %v433
    %v542 = vmul.f32 %v531, %v488
    %v543 = vsub.f32 %v541, %v542
    %v544 = vmul.f32 %v531, %v433
    %v545 = vmul.f32 %v530, %v488
    %v546 = vadd.f32 %v544, %v545
    %v547 = vmul.f32 %v530, %v439
    %v548 = vmul.f32 %v531, %v494
    %v549 = vsub.f32 %v547, %v548
    %v550 = vmul.f32 %v531, %v439
    %v551 = vmul.f32 %v530, %v494
    %v552 = vadd.f32 %v550, %v551
    %v553 = vmul.f32 %v530, %v445
    %v554 = vmul.f32 %v531, %v500
    %v555 = vsub.f32 %v553, %v554
    %v556 = vmul.f32 %v531, %v445
    %v557 = vmul.f32 %v530, %v500
    %v558 = vadd.f32 %v556, %v557
    %v559 = vand.u32 2147483647, %v537
    %vm560 = vcmp.lt.f32.partialorder %v559, 1e-30
    %v561 = vmul.f32 %v537, 2.0
    %v562 = vsel %vm560, 1.0, %v561
    %v563 = vsub.f32 %v479, %v533
    %v564 = vrcp.pop %v562
    %v565 = vmul.f32 %v563, %v564
    %v566 = vmax.f32 %v565, -1e+15
    %v567 = vmin.f32 %v566, 1e+15
    %v568 = vand.u32 2147483647, %v567
    %vm569 = vcmp.ge.f32.partialorder %v567, 0.0
    %v570 = vsel %vm569, 1.0, -1.0
    %v571 = vmul.f32 %v567, %v567
    %v572 = vadd.f32 %v571, 1.0
    %v573 = vrsqrt.pop %v572
    %v574 = vmul.f32 %v572, %v573
    %vm575 = vcmp.eq.f32.partialorder %v572, inf
    %v576 = vsel %vm575, %v572, %v574
    %vm577 = vcmp.eq.f32.partialorder %v572, 0.0
    %v578 = vand.u32 %v572, 2147483648
    %v579 = vsel %vm577, %v578, %v576
    %v580 = vsub.f32 %v579, %v568
    %v581 = vmul.f32 %v570, %v580
    %v582 = vsel %vm560, 0.0, %v581
    %v583 = vmul.f32 %v582, %v582
    %v584 = vadd.f32 %v583, 1.0
    %v585 = vrsqrt.pop %v584
    %v586 = vmul.f32 %v582, %v585
    %v587 = vmul.f32 %v582, %v537
    %v588 = vsub.f32 %v533, %v587
    %v589 = vadd.f32 %v479, %v587
    %v590 = vmul.f32 %v586, 0.0
    %v591 = vmul.f32 %v585, %v540
    %v592 = vadd.f32 %v590, %v591
    %v593 = vmul.f32 %v585, %v543
    %v594 = vmul.f32 %v586, %v491
    %v595 = vsub.f32 %v593, %v594
    %v596 = vmul.f32 %v586, %v543
    %v597 = vmul.f32 %v585, %v491
    %v598 = vadd.f32 %v596, %v597
    %v599 = vmul.f32 %v585, %v549
    %v600 = vmul.f32 %v586, %v497
    %v601 = vsub.f32 %v599, %v600
    %v602 = vmul.f32 %v586, %v549
    %v603 = vmul.f32 %v585, %v497
    %v604 = vadd.f32 %v602, %v603
    %v605 = vmul.f32 %v585, %v555
    %v606 = vmul.f32 %v586, %v503
    %v607 = vsub.f32 %v605, %v606
    %v608 = vmul.f32 %v586, %v555
    %v609 = vmul.f32 %v585, %v503
    %v610 = vadd.f32 %v608, %v609
    %v611 = vand.u32 2147483647, %v592
    %vm612 = vcmp.lt.f32.partialorder %v611, 1e-30
    %v613 = vmul.f32 %v592, 2.0
    %v614 = vsel %vm612, 1.0, %v613
    %v615 = vsub.f32 %v589, %v534
    %v616 = vrcp.pop %v614
    %v617 = vmul.f32 %v615, %v616
    %v618 = vmax.f32 %v617, -1e+15
    %v619 = vmin.f32 %v618, 1e+15
    %v620 = vand.u32 2147483647, %v619
    %vm621 = vcmp.ge.f32.partialorder %v619, 0.0
    %v622 = vsel %vm621, 1.0, -1.0
    %v623 = vmul.f32 %v619, %v619
    %v624 = vadd.f32 %v623, 1.0
    %v625 = vrsqrt.pop %v624
    %v626 = vmul.f32 %v624, %v625
    %vm627 = vcmp.eq.f32.partialorder %v624, inf
    %v628 = vsel %vm627, %v624, %v626
    %vm629 = vcmp.eq.f32.partialorder %v624, 0.0
    %v630 = vand.u32 %v624, 2147483648
    %v631 = vsel %vm629, %v630, %v628
    %v632 = vsub.f32 %v631, %v620
    %v633 = vmul.f32 %v622, %v632
    %v634 = vsel %vm612, 0.0, %v633
    %v635 = vmul.f32 %v634, %v634
    %v636 = vadd.f32 %v635, 1.0
    %v637 = vrsqrt.pop %v636
    %v638 = vmul.f32 %v634, %v637
    %v639 = vmul.f32 %v634, %v592
    %v640 = vsub.f32 %v534, %v639
    %v641 = vadd.f32 %v589, %v639
    %v642 = vmul.f32 %v637, %v546
    %v643 = vmul.f32 %v638, %v598
    %v644 = vsub.f32 %v642, %v643
    %v645 = vmul.f32 %v638, %v546
    %v646 = vmul.f32 %v637, %v598
    %v647 = vadd.f32 %v645, %v646
    %v648 = vmul.f32 %v637, %v552
    %v649 = vmul.f32 %v638, %v604
    %v650 = vsub.f32 %v648, %v649
    %v651 = vmul.f32 %v638, %v552
    %v652 = vmul.f32 %v637, %v604
    %v653 = vadd.f32 %v651, %v652
    %v654 = vmul.f32 %v637, %v558
    %v655 = vmul.f32 %v638, %v610
    %v656 = vsub.f32 %v654, %v655
    %v657 = vmul.f32 %v638, %v558
    %v658 = vmul.f32 %v637, %v610
    %v659 = vadd.f32 %v657, %v658
    %v660 = vmax.f32 %v588, %v640
    %v661 = vmax.f32 %v660, %v641
    %v662 = vmin.f32 %v588, %v640
    %v663 = vmin.f32 %v662, %v641
    %v664 = vadd.f32 %v588, %v640
    %v665 = vadd.f32 %v664, %v641
    %v666 = vsub.f32 %v665, %v661
    %v667 = vsub.f32 %v666, %v663
    %vm668 = vcmp.ge.f32.partialorder %v588, %v640
    %vm669 = vcmp.ge.f32.partialorder %v588, %v641
    %vm670 = vmand %vm668, %vm669
    %vm671 = vmxor %vm670, 1
    %vm672 = vcmp.ge.f32.partialorder %v640, %v641
    %vm673 = vmand %vm671, %vm672
    %v674 = vsel %vm673, %v644, %v647
    %v675 = vsel %vm670, %v595, %v674
    %v676 = vsel %vm673, %v650, %v653
    %v677 = vsel %vm670, %v601, %v676
    %v678 = vsel %vm673, %v656, %v659
    %v679 = vsel %vm670, %v607, %v678
    %v680 = vmax.f32 %v661, 1e-30
    %v681 = vrcp.pop %v680
    %v682 = vmul.f32 %v680, %v681
    %v683 = vsub.f32 2.0, %v682
    %v684 = vmul.f32 %v681, %v683
    %v685 = vmul.f32 %v667, %v684
    %v686 = vsub.f32 1.0, %v685
    %v687 = vmul.f32 %v675, %v69
    %v688 = vmul.f32 %v675, %v70
    %v689 = vmul.f32 %v675, %v71
    %v690 = vmul.f32 %v677, %v92
    %v691 = vmul.f32 %v677, %v93
    %v692 = vmul.f32 %v677, %v94
    %v693 = vadd.f32 %v687, %v690
    %v694 = vadd.f32 %v688, %v691
    %v695 = vadd.f32 %v689, %v692
    %v696 = vmul.f32 %v679, %v115
    %v697 = vmul.f32 %v679, %v116
    %v698 = vmul.f32 %v679, %v117
    %v699 = vadd.f32 %v693, %v696
    %v700 = vadd.f32 %v694, %v697
    %v701 = vadd.f32 %v695, %v698
    %v702 = vmul.f32 %v699, %v699
    %v703 = vmul.f32 %v700, %v700
    %v704 = vmul.f32 %v701, %v701
    %v705 = vsub.f32 %v130, %v702
    %v706 = vsub.f32 %v131, %v703
    %v707 = vsub.f32 %v132, %v704
    %v708 = vmax.f32 %v705, 0.0
    %v709 = vmax.f32 %v706, 0.0
    %v710 = vmax.f32 %v707, 0.0
    %v711 = vrsqrt.pop %v708
    %v712 = vmul.f32 %v708, %v711
    %vm713 = vcmp.eq.f32.partialorder %v708, inf
    %v714 = vsel %vm713, %v708, %v712
    %vm715 = vcmp.eq.f32.partialorder %v708, 0.0
    %v716 = vand.u32 %v708, 2147483648
    %v717 = vsel %vm715, %v716, %v714
    %v718 = vrsqrt.pop %v709
    %v719 = vmul.f32 %v709, %v718
    %vm720 = vcmp.eq.f32.partialorder %v709, inf
    %v721 = vsel %vm720, %v709, %v719
    %vm722 = vcmp.eq.f32.partialorder %v709, 0.0
    %v723 = vand.u32 %v709, 2147483648
    %v724 = vsel %vm722, %v723, %v721
    %v725 = vrsqrt.pop %v710
    %v726 = vmul.f32 %v710, %v725
    %vm727 = vcmp.eq.f32.partialorder %v710, inf
    %v728 = vsel %vm727, %v710, %v726
    %vm729 = vcmp.eq.f32.partialorder %v710, 0.0
    %v730 = vand.u32 %v710, 2147483648
    %v731 = vsel %vm729, %v730, %v728
    %v732 = vmul.f32 %v699, %v717
    %v733 = vmul.f32 %v700, %v724
    %v734 = vmul.f32 %v701, %v731
    %v735 = vadd.f32 %v732, %v733
    %v736 = vadd.f32 %v735, %v734
    %v737 = vrot.slane %v736, 4
    %v738 = vadd.f32 %v736, %v737
    %v739 = vrot.slane %v738, 2
    %v740 = vadd.f32 %v738, %v739
    %v741 = vrot.slane %v740, 1
    %v742 = vadd.f32 %v740, %v741
    %vm743 = vcmp.lt.f32.partialorder %v742, 0.0
    %v744 = vsel %vm743, -1.0, 1.0
    %vm745 = vcmp.ge.f32.partialorder %v26, 2.0
    %v746 = vmul.f32 %v140, %v684
    %v747 = vsel %vm745, %v746, 0.0
    %v748 = vmul.f32 %v167, %v684
    %v749 = vsel %vm745, %v748, 0.0
    %v750 = vmul.f32 %v178, %v684
    %v751 = vsel %vm745, %v750, 0.0
    %v752 = vmul.f32 %v148, %v684
    %v753 = vsel %vm745, %v752, 0.0
    %v754 = vmul.f32 %v189, %v684
    %v755 = vsel %vm745, %v754, 0.0
    %v756 = vmul.f32 %v156, %v684
    %v757 = vsel %vm745, %v756, 0.0
    %v758 = vmul.f32 %v744, %v686
    %v759 = vmul.f32 %v758, %v675
    %v760 = vsel %vm745, %v759, 0.0
    %v761 = vmul.f32 %v758, %v677
    %v762 = vsel %vm745, %v761, 0.0
    %v763 = vmul.f32 %v758, %v679
    %v764 = vsel %vm745, %v763, 0.0
    %v766 = vrot.slane %v84, 7
    %v769 = vrot.slane %v107, 6
    %v772 = vlaneseq
    %v773 = vshrl.u32 %v772, 7
    %v774 = vsub.s32 0, %v773
    %v775 = vrot.slane %v747, %v774
    %v778 = vlaneseq
    %v779 = vshrl.u32 %v778, 7
    %v780 = vsub.s32 0, %v779
    %v781 = vrot.slane %v749, %v780
    %v784 = vlaneseq
    %v785 = vshrl.u32 %v784, 7
    %v786 = vsub.s32 0, %v785
    %v787 = vrot.slane %v751, %v786
    %v790 = vlaneseq
    %v791 = vshrl.u32 %v790, 7
    %v792 = vsub.s32 0, %v791
    %v793 = vrot.slane %v753, %v792
    %v796 = vlaneseq
    %v797 = vshrl.u32 %v796, 7
    %v798 = vsub.s32 0, %v797
    %v799 = vrot.slane %v755, %v798
    %v802 = vlaneseq
    %v803 = vshrl.u32 %v802, 7
    %v804 = vsub.s32 0, %v803
    %v805 = vrot.slane %v757, %v804
    %v808 = vlaneseq
    %v809 = vshrl.u32 %v808, 7
    %v810 = vsub.s32 0, %v809
    %v811 = vrot.slane %v760, %v810
    %v814 = vlaneseq
    %v815 = vshrl.u32 %v814, 7
    %v816 = vsub.s32 0, %v815
    %v817 = vrot.slane %v762, %v816
    %v820 = vlaneseq
    %v821 = vshrl.u32 %v820, 7
    %v822 = vsub.s32 0, %v821
    %v823 = vrot.slane %v764, %v822
    %v826 = vlaneseq
    %v827 = vshrl.u32 %v826, 7
    %v828 = vsub.s32 0, %v827
    %v829 = vrot.slane %v26, %v828
    %vm831 = vcmask 1040384
    %v832 = vsel %vm831, %v61, %v766
    %vm833 = vcmask 1041408
    %v834 = vsel %vm833, %v832, %v769
    %vm835 = vcmask 1042432
    %v836 = vsel %vm835, %v834, %v775
    %vm837 = vcmask 1043456
    %v838 = vsel %vm837, %v836, %v781
    %vm839 = vcmask 1044480
    %v840 = vsel %vm839, %v838, %v787
    %vm841 = vcmask 1045504
    %v842 = vsel %vm841, %v840, %v781
    %vm843 = vcmask 1046528
    %v844 = vsel %vm843, %v842, %v793
    %v845 = vsel %vm831, %v755, %v787
    %v846 = vsel %vm833, %v845, %v799
    %v847 = vsel %vm835, %v846, %v805
    %v848 = vsel %vm837, %v847, %v811
    %v849 = vsel %vm839, %v848, %v817
    %v850 = vsel %vm841, %v849, %v823
    %v851 = vsel %vm843, %v850, %v829
    %852 = vst [vmem:[#allocation5] sm:$0xff] %v844
    %853 = vst [vmem:[#allocation5 + $0x8] sm:$0xff] %v851
    // Predicated region
    $region14: #{tpu_custom_call.1} parent=1 // pred_check
      _
    $region15: #{tpu_custom_call.1} parent=1 // pred_check_branch
      %855 = sbr.rel (0) target = $region17
    $region16: #{tpu_custom_call.1} parent=1 // pred_region
      %s857 = ssub.s32 256, 256
      %858 = vsyncadd [#allocation4], %s857
      %s859 = sshll.u32 [#allocation5], 4
      %s860 = int_to_ptr.vmem [resolvable:$true] %s859
      %865 = dma.vmem_to_hbm [thread:$0]  %s860, 256, %s2, [#allocation4], 128, 128, 8
    $region17: #{tpu_custom_call.1} parent=1 // pred_fallthru
      _
    // Predicated region
    $region18: #{tpu_custom_call.1} parent=1 // pred_check
      _
    $region19: #{tpu_custom_call.1} parent=1 // pred_check_branch
      %867 = sbr.rel (0) target = $region21
    $region20: #{tpu_custom_call.1} parent=1 // pred_region
      %868 = dma.done [#allocation4], 256
    $region21: #{tpu_custom_call.1} parent=1 // pred_fallthru
      _
    %869 = vsyncpa [#allocation3], 1
    %870 = vsyncpa [#allocation4], 1

</llo_original>
